<compile_context>
chip_gen: v7x
topology: tpu7x:2x2x1
jax: 0.10.0
libtpu: 0.0.40
codegen_flags: <defaults>
</compile_context>

<pallas_src>
import jax
import jax.numpy as jnp
from jax import lax
from jax.experimental import pallas as pl
from jax.experimental.pallas import tpu as pltpu

NUM_MODELS = 2
C_IN = 4
C_MID = 8
NUM_OUT = 16
H = W = 16
HW = H * W
KH = KW = 3
KC = KH * KW * C_IN            # 36 fused patch channels, row = (kh*3+kw)*C_IN + cin
NMC = NUM_MODELS * C_MID       # 16 fused conv output channels, row = m*C_MID + cmid


def _round_up(n, m):
    return ((n + m - 1) // m) * m


def _split_backbones_kernel(sel_ref, p_ref, wconv_ref, bconv_ref, wfc_ref, bfc_ref,
                            out_ref):
    """One grid step: TB samples for ALL models, routed per sample.

    sel_ref:   (1, TB)              int32 selector (padded rows = -1)
    p_ref:     (KC, TB*HW)          im2col patches, spatial-batch lane-dense
    wconv_ref: (NMC, KC)            fused conv weights (all models)
    bconv_ref: (NMC, 1)             fused conv bias
    wfc_ref:   (M, NUM_OUT, C_MID)  per-model FC weights (pre-transposed)
    bfc_ref:   (M, NUM_OUT, 1)      per-model FC bias
    out_ref:   (NUM_OUT, TB)        routed output (batch on lanes)
    """
    tb = out_ref.shape[1]

    # Conv3x3 for both models as ONE fused matmul; big dim on the lane/N side.
    conv = jnp.dot(wconv_ref[...], p_ref[...], preferred_element_type=jnp.float32)
    conv = jnp.maximum(conv + bconv_ref[...], 0.0)            # bias + ReLU, (NMC, TB*HW)

    # Global average pool per sample: (NMC, TB, HW) -> (NMC, TB).
    pooled = jnp.mean(conv.reshape(NMC, tb, HW), axis=-1)

    sel = sel_ref[...]                                         # (1, TB)
    out = jnp.zeros((NUM_OUT, tb), jnp.float32)
    for m in range(NUM_MODELS):
        pooled_m = pooled[m * C_MID:(m + 1) * C_MID, :]        # (C_MID, TB), tile-aligned
        logits = jnp.dot(wfc_ref[m], pooled_m,
                         preferred_element_type=jnp.float32) + bfc_ref[m]
        # Samples whose selector matches no model stay zero (torch.zeros scatter).
        out = out + jnp.where(sel == m, logits, 0.0)
    out_ref[...] = out


def split_backbones_forward(x_nchw, selector, params, *, tb=None):
    """Pallas equivalent of SplitBackbones.forward.

    x_nchw:   (B, C_IN, H, W) float32 (PyTorch NCHW convention).
    selector: any shape squeezable to (B,), integer model id per sample.
    Returns a list with one (B, NUM_OUT) float32 array (backbone has one output).
    """
    B = x_nchw.shape[0]
    sel = jnp.reshape(selector, (-1,)).astype(jnp.int32)       # selector.squeeze()

    # Batch tile: one grid step covers the whole batch when B <= 128 (block == array),
    # otherwise 128-wide steps so selector/output block lane dims stay 128-aligned.
    if tb is None:
        tb = 128 if B > 128 else _round_up(max(B, 1), 8)
    b_pad = _round_up(B, tb)
    assert (tb % 128 == 0) or (tb == b_pad), "tb must be 128-aligned or cover the batch"

    # --- host-side glue: NCHW -> NHWC, SAME-pad, im2col into a lane-dense layout ---
    x = jnp.transpose(x_nchw, (0, 2, 3, 1)).astype(jnp.float32)          # (B,H,W,C)
    x = jnp.pad(x, ((0, b_pad - B), (1, 1), (1, 1), (0, 0)))
    taps = [x[:, kh:kh + H, kw:kw + W, :] for kh in range(KH) for kw in range(KW)]
    patches = jnp.stack(taps, axis=0)                                    # (9,b_pad,H,W,C)
    patches = jnp.transpose(patches, (0, 4, 1, 2, 3)).reshape(KC, b_pad * HW)

    sel = jnp.pad(sel, (0, b_pad - B), constant_values=-1).reshape(1, b_pad)

    # Fused conv weights (model-major rows, (tap, cin) columns) + per-model FC.
    wconv_f = jnp.transpose(params["wconv"], (0, 4, 1, 2, 3)).reshape(NMC, KC)
    bconv_f = params["bconv"].reshape(NMC, 1)
    wfc_t = jnp.transpose(params["wfc"], (0, 2, 1))                      # (M,NUM_OUT,C_MID)
    bfc = params["bfc"].reshape(NUM_MODELS, NUM_OUT, 1)

    out = pl.pallas_call(
        _split_backbones_kernel,
        out_shape=jax.ShapeDtypeStruct((NUM_OUT, b_pad), jnp.float32),
        grid=(b_pad // tb,),
        in_specs=[
            pl.BlockSpec((1, tb), lambda i: (0, i)),                     # selector
            pl.BlockSpec((KC, tb * HW), lambda i: (0, i)),               # patches
            pl.BlockSpec((NMC, KC), lambda i: (0, 0)),                   # conv W (resident)
            pl.BlockSpec((NMC, 1), lambda i: (0, 0)),                    # conv b
            pl.BlockSpec((NUM_MODELS, NUM_OUT, C_MID), lambda i: (0, 0, 0)),
            pl.BlockSpec((NUM_MODELS, NUM_OUT, 1), lambda i: (0, 0, 0)),
        ],
        out_specs=pl.BlockSpec((NUM_OUT, tb), lambda i: (0, i)),
        compiler_params=pltpu.CompilerParams(
            dimension_semantics=("parallel",),
            vmem_limit_bytes=48 * 1024 * 1024),
    )(sel, patches, wconv_f, bconv_f, wfc_t, bfc)

    return [out[:, :B].T]                                                # (B, NUM_OUT)


def init_params(key):
    """Deterministic synthetic parameters for each of the NUM_MODELS backbones."""
    k1, k2, k3, k4 = jax.random.split(key, 4)
    return {
        "wconv": 0.1 * jax.random.normal(k1, (NUM_MODELS, KH, KW, C_IN, C_MID), jnp.float32),
        "bconv": 0.1 * jax.random.normal(k2, (NUM_MODELS, C_MID), jnp.float32),
        "wfc":   0.1 * jax.random.normal(k3, (NUM_MODELS, C_MID, NUM_OUT), jnp.float32),
        "bfc":   0.1 * jax.random.normal(k4, (NUM_MODELS, NUM_OUT), jnp.float32),
    }


def ref_forward(x_nchw, selector, params):
    """Plain-JAX reference reproducing the routed forward pass."""
    sel = jnp.reshape(selector, (-1,)).astype(jnp.int32)
    x = jnp.transpose(x_nchw, (0, 2, 3, 1)).astype(jnp.float32)
    B = x.shape[0]
    outs = []
    for m in range(NUM_MODELS):
        y = lax.conv_general_dilated(
            x, params["wconv"][m], (1, 1), "SAME",
            dimension_numbers=("NHWC", "HWIO", "NHWC"))
        y = jnp.maximum(y + params["bconv"][m], 0.0)
        pooled = jnp.mean(y, axis=(1, 2))
        outs.append(pooled @ params["wfc"][m] + params["bfc"][m])
    outs = jnp.stack(outs, 0)                                            # (M, B, NUM_OUT)
    gathered = outs[jnp.clip(sel, 0, NUM_MODELS - 1), jnp.arange(B)]
    valid = (sel >= 0) & (sel < NUM_MODELS)
    return [jnp.where(valid[:, None], gathered, 0.0)]


if __name__ == "__main__":
    key = jax.random.PRNGKey(0)
    kx, _ = jax.random.split(key)
    B = 4
    x = jax.random.normal(kx, (B, C_IN, H, W), jnp.float32)              # NCHW, like PyTorch
    selector = jnp.array([[0], [1], [1], [0]], dtype=jnp.int32)          # (B, 1)
    params = init_params(jax.random.PRNGKey(42))

    out = split_backbones_forward(x, selector, params)
    out = [jax.block_until_ready(o) for o in out]

    ref = ref_forward(x, selector, params)
    for o, r in zip(out, ref):
        assert o.shape == r.shape and o.dtype == r.dtype
        assert jnp.allclose(o, r, atol=1e-4, rtol=1e-4), "mismatch vs reference"
    print("KERNEL_OK")
</pallas_src>

<mosaic_0001>
module attributes {stable_mosaic.version = 11 : i64} {
  func.func @_split_backbones_kernel(%arg0: i32, %arg1: memref<1x8xi32, #tpu.memory_space<vmem>>, %arg2: memref<36x2048xf32, #tpu.memory_space<vmem>>, %arg3: memref<16x36xf32, #tpu.memory_space<vmem>>, %arg4: memref<16x1xf32, #tpu.memory_space<vmem>>, %arg5: memref<2x16x8xf32, #tpu.memory_space<vmem>>, %arg6: memref<2x16x1xf32, #tpu.memory_space<vmem>>, %arg7: memref<16x8xf32, #tpu.memory_space<vmem>>) attributes {dimension_semantics = [#tpu.dimension_semantics<parallel>], iteration_bounds = array<i64: 1>, scalar_prefetch = 0 : i64, scratch_operands = 0 : i64, tpu.core_type = #tpu.core_type<tc>, window_params = [{transform_indices = @transform_0, window_bounds = array<i64: 1, 8>}, {transform_indices = @transform_1, window_bounds = array<i64: 36, 2048>}, {pipeline_mode = #tpu.pipeline_mode<synchronous>, transform_indices = @transform_2, window_bounds = array<i64: 16, 36>}, {pipeline_mode = #tpu.pipeline_mode<synchronous>, transform_indices = @transform_3, window_bounds = array<i64: 16, 1>}, {pipeline_mode = #tpu.pipeline_mode<synchronous>, transform_indices = @transform_4, window_bounds = array<i64: 2, 16, 8>}, {pipeline_mode = #tpu.pipeline_mode<synchronous>, transform_indices = @transform_5, window_bounds = array<i64: 2, 16, 1>}, {transform_indices = @transform_6, window_bounds = array<i64: 16, 8>}]} {
    %c0 = arith.constant 0 : index
    %c0_0 = arith.constant 0 : index
    %0 = vector.load %arg3[%c0, %c0_0] : memref<16x36xf32, #tpu.memory_space<vmem>>, vector<16x36xf32>
    %c0_1 = arith.constant 0 : index
    %c0_2 = arith.constant 0 : index
    %1 = vector.load %arg2[%c0_1, %c0_2] : memref<36x2048xf32, #tpu.memory_space<vmem>>, vector<36x2048xf32>
    %cst = arith.constant dense<0.000000e+00> : vector<16x2048xf32>
    %2 = tpu.matmul %0, %1, %cst {dimension_numbers = #tpu.dot_dimension_numbers<[1], [0], [0], [1], [0, 0, 1, 1], [], []>} : vector<16x36xf32>, vector<36x2048xf32>, vector<16x2048xf32> -> vector<16x2048xf32>
    %c0_3 = arith.constant 0 : index
    %c0_4 = arith.constant 0 : index
    %3 = vector.load %arg4[%c0_3, %c0_4] : memref<16x1xf32, #tpu.memory_space<vmem>>, vector<16x1xf32>
    %4 = vector.broadcast %3 : vector<16x1xf32> to vector<16x2048xf32>
    %5 = arith.addf %2, %4 : vector<16x2048xf32>
    %cst_5 = arith.constant 0.000000e+00 : f32
    %6 = vector.broadcast %cst_5 : f32 to vector<16x2048xf32>
    %7 = arith.maximumf %5, %6 : vector<16x2048xf32>
    %8 = vector.shape_cast %7 : vector<16x2048xf32> to vector<16x8x256xf32>
    %cst_6 = arith.constant dense<0.000000e+00> : vector<16x8xf32>
    %9 = vector.multi_reduction <add>, %8, %cst_6 [2] : vector<16x8x256xf32> to vector<16x8xf32>
    %cst_7 = arith.constant 2.560000e+02 : f32
    %10 = vector.broadcast %cst_7 : f32 to vector<16x8xf32>
    %11 = arith.divf %9, %10 : vector<16x8xf32>
    %c0_8 = arith.constant 0 : index
    %c0_9 = arith.constant 0 : index
    %12 = vector.load %arg1[%c0_8, %c0_9] : memref<1x8xi32, #tpu.memory_space<vmem>>, vector<1x8xi32>
    %cst_10 = arith.constant 0.000000e+00 : f32
    %13 = vector.broadcast %cst_10 : f32 to vector<16x8xf32>
    %14 = vector.extract_strided_slice %11 {offsets = [0, 0], sizes = [8, 8], strides = [1, 1]} : vector<16x8xf32> to vector<8x8xf32>
    %c0_11 = arith.constant 0 : index
    %c0_12 = arith.constant 0 : index
    %c0_13 = arith.constant 0 : index
    %15 = vector.load %arg5[%c0_11, %c0_12, %c0_13] : memref<2x16x8xf32, #tpu.memory_space<vmem>>, vector<1x16x8xf32>
    %16 = vector.shape_cast %15 : vector<1x16x8xf32> to vector<16x8xf32>
    %cst_14 = arith.constant dense<0.000000e+00> : vector<16x8xf32>
    %17 = tpu.matmul %16, %14, %cst_14 {dimension_numbers = #tpu.dot_dimension_numbers<[1], [0], [0], [1], [0, 0, 1, 1], [], []>} : vector<16x8xf32>, vector<8x8xf32>, vector<16x8xf32> -> vector<16x8xf32>
    %c0_15 = arith.constant 0 : index
    %c0_16 = arith.constant 0 : index
    %c0_17 = arith.constant 0 : index
    %18 = vector.load %arg6[%c0_15, %c0_16, %c0_17] : memref<2x16x1xf32, #tpu.memory_space<vmem>>, vector<1x16x1xf32>
    %19 = vector.shape_cast %18 : vector<1x16x1xf32> to vector<16x1xf32>
    %20 = vector.broadcast %19 : vector<16x1xf32> to vector<16x8xf32>
    %21 = arith.addf %17, %20 : vector<16x8xf32>
    %c0_i32 = arith.constant 0 : i32
    %22 = vector.broadcast %c0_i32 : i32 to vector<1x8xi32>
    %23 = arith.cmpi eq, %12, %22 : vector<1x8xi32>
    %cst_18 = arith.constant 0.000000e+00 : f32
    %24 = vector.shape_cast %23 : vector<1x8xi1> to vector<1x8xi1>
    %25 = vector.broadcast %24 : vector<1x8xi1> to vector<16x8xi1>
    %26 = vector.broadcast %cst_18 : f32 to vector<16x8xf32>
    %27 = arith.select %25, %21, %26 : vector<16x8xi1>, vector<16x8xf32>
    %28 = arith.addf %13, %27 : vector<16x8xf32>
    %29 = vector.extract_strided_slice %11 {offsets = [8, 0], sizes = [8, 8], strides = [1, 1]} : vector<16x8xf32> to vector<8x8xf32>
    %c1 = arith.constant 1 : index
    %c0_19 = arith.constant 0 : index
    %c0_20 = arith.constant 0 : index
    %30 = vector.load %arg5[%c1, %c0_19, %c0_20] : memref<2x16x8xf32, #tpu.memory_space<vmem>>, vector<1x16x8xf32>
    %31 = vector.shape_cast %30 : vector<1x16x8xf32> to vector<16x8xf32>
    %cst_21 = arith.constant dense<0.000000e+00> : vector<16x8xf32>
    %32 = tpu.matmul %31, %29, %cst_21 {dimension_numbers = #tpu.dot_dimension_numbers<[1], [0], [0], [1], [0, 0, 1, 1], [], []>} : vector<16x8xf32>, vector<8x8xf32>, vector<16x8xf32> -> vector<16x8xf32>
    %c1_22 = arith.constant 1 : index
    %c0_23 = arith.constant 0 : index
    %c0_24 = arith.constant 0 : index
    %33 = vector.load %arg6[%c1_22, %c0_23, %c0_24] : memref<2x16x1xf32, #tpu.memory_space<vmem>>, vector<1x16x1xf32>
    %34 = vector.shape_cast %33 : vector<1x16x1xf32> to vector<16x1xf32>
    %35 = vector.broadcast %34 : vector<16x1xf32> to vector<16x8xf32>
    %36 = arith.addf %32, %35 : vector<16x8xf32>
    %c1_i32 = arith.constant 1 : i32
    %37 = vector.broadcast %c1_i32 : i32 to vector<1x8xi32>
    %38 = arith.cmpi eq, %12, %37 : vector<1x8xi32>
    %cst_25 = arith.constant 0.000000e+00 : f32
    %39 = vector.shape_cast %38 : vector<1x8xi1> to vector<1x8xi1>
    %40 = vector.broadcast %39 : vector<1x8xi1> to vector<16x8xi1>
    %41 = vector.broadcast %cst_25 : f32 to vector<16x8xf32>
    %42 = arith.select %40, %36, %41 : vector<16x8xi1>, vector<16x8xf32>
    %43 = arith.addf %28, %42 : vector<16x8xf32>
    %c0_26 = arith.constant 0 : index
    %c0_27 = arith.constant 0 : index
    %44 = vector.load %arg7[%c0_26, %c0_27] : memref<16x8xf32, #tpu.memory_space<vmem>>, vector<16x8xf32>
    tpu.vector_store %arg7[%c0_26, %c0_27], %43 {strides = array<i32>} : memref<16x8xf32, #tpu.memory_space<vmem>>, vector<16x8xf32>,
    return
  }
  func.func @transform_0(%arg0: i32) -> (i32, i32) {
    %c0_i32 = arith.constant 0 : i32
    %c0_i32_0 = arith.constant 0 : i32
    return %c0_i32, %arg0 : i32, i32
  }
  func.func @transform_1(%arg0: i32) -> (i32, i32) {
    %c0_i32 = arith.constant 0 : i32
    %c0_i32_0 = arith.constant 0 : i32
    return %c0_i32, %arg0 : i32, i32
  }
  func.func @transform_2(%arg0: i32) -> (i32, i32) {
    %c0_i32 = arith.constant 0 : i32
    %c0_i32_0 = arith.constant 0 : i32
    %c0_i32_1 = arith.constant 0 : i32
    return %c0_i32, %c0_i32_0 : i32, i32
  }
  func.func @transform_3(%arg0: i32) -> (i32, i32) {
    %c0_i32 = arith.constant 0 : i32
    %c0_i32_0 = arith.constant 0 : i32
    %c0_i32_1 = arith.constant 0 : i32
    return %c0_i32, %c0_i32_0 : i32, i32
  }
  func.func @transform_4(%arg0: i32) -> (i32, i32, i32) {
    %c0_i32 = arith.constant 0 : i32
    %c0_i32_0 = arith.constant 0 : i32
    %c0_i32_1 = arith.constant 0 : i32
    %c0_i32_2 = arith.constant 0 : i32
    return %c0_i32, %c0_i32_0, %c0_i32_1 : i32, i32, i32
  }
  func.func @transform_5(%arg0: i32) -> (i32, i32, i32) {
    %c0_i32 = arith.constant 0 : i32
    %c0_i32_0 = arith.constant 0 : i32
    %c0_i32_1 = arith.constant 0 : i32
    %c0_i32_2 = arith.constant 0 : i32
    return %c0_i32, %c0_i32_0, %c0_i32_1 : i32, i32, i32
  }
  func.func @transform_6(%arg0: i32) -> (i32, i32) {
    %c0_i32 = arith.constant 0 : i32
    %c0_i32_0 = arith.constant 0 : i32
    return %c0_i32, %arg0 : i32, i32
  }
}

</mosaic_0001>

<llo_original>
// kernel: tpu_custom_call.1
$region0: #{tpu_custom_call.1}
  #allocation0 [shape = 'u32[]', space=smem, size = 0x4, offset = 0x4, fixed_abs, tag = 'smem constant byte address 0x4 - core index']
  #allocation1 [shape = 'u32[144,128]{1,0:T(1,128)}', space=vmem, size = 0x12000, scoped, tag = 'internal scratch']
  %s0 = inlined_call_operand.vmem [shape: s32[1,8], index: 0, kind: input, shape index: {}]
  %s1 = inlined_call_operand.hbm [shape: f32[36,2048], index: 1, kind: input, shape index: {}]
  %s2 = inlined_call_operand.vmem [shape: f32[16,36], index: 2, kind: input, shape index: {}]
  %s3 = inlined_call_operand.vmem [shape: f32[16,1], index: 3, kind: input, shape index: {}]
  %s4 = inlined_call_operand.vmem [shape: f32[2,16,8], index: 4, kind: input, shape index: {}]
  %s5 = inlined_call_operand.vmem [shape: f32[2,16,1], index: 5, kind: input, shape index: {}]
  %s6 = inlined_call_operand.vmem [shape: f32[16,8], index: 6, kind: output, shape index: {}]
  %s7 = sld [smem:[#allocation0]]
  $region38: #{tpu_custom_call.1} parent=0
    _
  %s9 = ssub.s32 1, %s7
  %s10 = scalar_select 0, %s9, %s7
  $region1: #{tpu_custom_call.1} parent=0
    #allocation2 [shape = 'u8[327680]{0}', space=vmem, size = 0x50000, scoped, tag = 'input window, operand 1, single buffered']
    #allocation3 [shape = 's32[1]{0}', space=sflag, size = 0x4, scoped, tag = 'scoped memory for tpu_custom_call.1']
    %11 = vsyncpa [#allocation3], 0
    // Predicated region
    $region2: #{tpu_custom_call.1} parent=1 // pred_check
      _
    $region3: #{tpu_custom_call.1} parent=1 // pred_check_branch
      %13 = sbr.rel (0) target = $region5
    $region4: #{tpu_custom_call.1} parent=1 // pred_region
      _
    $region5: #{tpu_custom_call.1} parent=1 // pred_fallthru
      _
    // Predicated region
    $region6: #{tpu_custom_call.1} parent=1 // pred_check
      _
    $region7: #{tpu_custom_call.1} parent=1 // pred_check_branch
      %15 = sbr.rel (0) target = $region9
    $region8: #{tpu_custom_call.1} parent=1 // pred_region
      %s17 = ssub.s32 10240, 10240
      %18 = vsyncadd [#allocation3], %s17
      %s19 = sshll.u32 [#allocation2], 4
      %s20 = int_to_ptr.vmem [resolvable:$true] %s19
      %25 = dma.hbm_to_vmem [thread:$0]  %s1, 10240, %s20, [#allocation3], 2048, 2048, 128
    $region9: #{tpu_custom_call.1} parent=1 // pred_fallthru
      _
    // Predicated region
    $region10: #{tpu_custom_call.1} parent=1 // pred_check
      _
    $region11: #{tpu_custom_call.1} parent=1 // pred_check_branch
      %27 = sbr.rel (0) target = $region13
    $region12: #{tpu_custom_call.1} parent=1 // pred_region
      _
    $region13: #{tpu_custom_call.1} parent=1 // pred_fallthru
      _
    // Predicated region
    $region14: #{tpu_custom_call.1} parent=1 // pred_check
      _
    $region15: #{tpu_custom_call.1} parent=1 // pred_check_branch
      %29 = sbr.rel (0) target = $region17
    $region16: #{tpu_custom_call.1} parent=1 // pred_region
      _
    $region17: #{tpu_custom_call.1} parent=1 // pred_fallthru
      _
    // Predicated region
    $region18: #{tpu_custom_call.1} parent=1 // pred_check
      _
    $region19: #{tpu_custom_call.1} parent=1 // pred_check_branch
      %31 = sbr.rel (0) target = $region21
    $region20: #{tpu_custom_call.1} parent=1 // pred_region
      _
    $region21: #{tpu_custom_call.1} parent=1 // pred_fallthru
      _
    // Predicated region
    $region22: #{tpu_custom_call.1} parent=1 // pred_check
      _
    $region23: #{tpu_custom_call.1} parent=1 // pred_check_branch
      %33 = sbr.rel (0) target = $region25
    $region24: #{tpu_custom_call.1} parent=1 // pred_region
      _
    $region25: #{tpu_custom_call.1} parent=1 // pred_fallthru
      _
    // Predicated region
    $region26: #{tpu_custom_call.1} parent=1 // pred_check
      _
    $region27: #{tpu_custom_call.1} parent=1 // pred_check_branch
      %35 = sbr.rel (0) target = $region29
    $region28: #{tpu_custom_call.1} parent=1 // pred_region
      %36 = dma.done [#allocation3], 10240
    $region29: #{tpu_custom_call.1} parent=1 // pred_fallthru
      _
    %v37 = vld [vmem:[%s2] sm:$0xff]
    %v38 = vld [vmem:[%s2 + $0x8] sm:$0xff]
    %v39 = vld [vmem:[#allocation2] sm:$0xff]
    %v40 = vld [vmem:[#allocation2 + $0x8] sm:$0xff]
    %v41 = vld [vmem:[#allocation2 + $0x10] sm:$0xff]
    %v42 = vld [vmem:[#allocation2 + $0x18] sm:$0xff]
    %v43 = vld [vmem:[#allocation2 + $0x20] sm:$0xff]
    %v44 = vld [vmem:[#allocation2 + $0x28] sm:$0xff]
    %v45 = vld [vmem:[#allocation2 + $0x30] sm:$0xff]
    %v46 = vld [vmem:[#allocation2 + $0x38] sm:$0xff]
    %v47 = vld [vmem:[#allocation2 + $0x40] sm:$0xff]
    %v48 = vld [vmem:[#allocation2 + $0x48] sm:$0xff]
    %v49 = vld [vmem:[#allocation2 + $0x50] sm:$0xff]
    %v50 = vld [vmem:[#allocation2 + $0x58] sm:$0xff]
    %v51 = vld [vmem:[#allocation2 + $0x60] sm:$0xff]
    %v52 = vld [vmem:[#allocation2 + $0x68] sm:$0xff]
    %v53 = vld [vmem:[#allocation2 + $0x70] sm:$0xff]
    %v54 = vld [vmem:[#allocation2 + $0x78] sm:$0xff]
    %v55 = vld [vmem:[#allocation2 + $0x80] sm:$0xff]
    %v56 = vld [vmem:[#allocation2 + $0x88] sm:$0xff]
    %v57 = vld [vmem:[#allocation2 + $0x90] sm:$0xff]
    %v58 = vld [vmem:[#allocation2 + $0x98] sm:$0xff]
    %v59 = vld [vmem:[#allocation2 + $0xa0] sm:$0xff]
    %v60 = vld [vmem:[#allocation2 + $0xa8] sm:$0xff]
    %v61 = vld [vmem:[#allocation2 + $0xb0] sm:$0xff]
    %v62 = vld [vmem:[#allocation2 + $0xb8] sm:$0xff]
    %v63 = vld [vmem:[#allocation2 + $0xc0] sm:$0xff]
    %v64 = vld [vmem:[#allocation2 + $0xc8] sm:$0xff]
    %v65 = vld [vmem:[#allocation2 + $0xd0] sm:$0xff]
    %v66 = vld [vmem:[#allocation2 + $0xd8] sm:$0xff]
    %v67 = vld [vmem:[#allocation2 + $0xe0] sm:$0xff]
    %v68 = vld [vmem:[#allocation2 + $0xe8] sm:$0xff]
    %v69 = vld [vmem:[#allocation2 + $0xf0] sm:$0xff]
    %v70 = vld [vmem:[#allocation2 + $0xf8] sm:$0xff]
    %v71 = vld [vmem:[#allocation2 + $0x100] sm:$0xff]
    %v72 = vld [vmem:[#allocation2 + $0x108] sm:$0xff]
    %v73 = vld [vmem:[#allocation2 + $0x110] sm:$0xff]
    %v74 = vld [vmem:[#allocation2 + $0x118] sm:$0xff]
    %v75 = vld [vmem:[#allocation2 + $0x120] sm:$0xff]
    %v76 = vld [vmem:[#allocation2 + $0x128] sm:$0xff]
    %v77 = vld [vmem:[#allocation2 + $0x130] sm:$0xff]
    %v78 = vld [vmem:[#allocation2 + $0x138] sm:$0xff]
    %v79 = vld [vmem:[#allocation2 + $0x140] sm:$0xff]
    %v80 = vld [vmem:[#allocation2 + $0x148] sm:$0xff]
    %v81 = vld [vmem:[#allocation2 + $0x150] sm:$0xff]
    %v82 = vld [vmem:[#allocation2 + $0x158] sm:$0xff]
    %v83 = vld [vmem:[#allocation2 + $0x160] sm:$0xff]
    %v84 = vld [vmem:[#allocation2 + $0x168] sm:$0xff]
    %v85 = vld [vmem:[#allocation2 + $0x170] sm:$0xff]
    %v86 = vld [vmem:[#allocation2 + $0x178] sm:$0xff]
    %v87 = vld [vmem:[#allocation2 + $0x180] sm:$0xff]
    %v88 = vld [vmem:[#allocation2 + $0x188] sm:$0xff]
    %v89 = vld [vmem:[#allocation2 + $0x190] sm:$0xff]
    %v90 = vld [vmem:[#allocation2 + $0x198] sm:$0xff]
    %v91 = vld [vmem:[#allocation2 + $0x1a0] sm:$0xff]
    %v92 = vld [vmem:[#allocation2 + $0x1a8] sm:$0xff]
    %v93 = vld [vmem:[#allocation2 + $0x1b0] sm:$0xff]
    %v94 = vld [vmem:[#allocation2 + $0x1b8] sm:$0xff]
    %v95 = vld [vmem:[#allocation2 + $0x1c0] sm:$0xff]
    %v96 = vld [vmem:[#allocation2 + $0x1c8] sm:$0xff]
    %v97 = vld [vmem:[#allocation2 + $0x1d0] sm:$0xff]
    %v98 = vld [vmem:[#allocation2 + $0x1d8] sm:$0xff]
    %v99 = vld [vmem:[#allocation2 + $0x1e0] sm:$0xff]
    %v100 = vld [vmem:[#allocation2 + $0x1e8] sm:$0xff]
    %v101 = vld [vmem:[#allocation2 + $0x1f0] sm:$0xff]
    %v102 = vld [vmem:[#allocation2 + $0x1f8] sm:$0xff]
    %v103 = vld [vmem:[#allocation2 + $0x200] sm:$0xf]
    %v104 = vld [vmem:[#allocation2 + $0x208] sm:$0xf]
    %v105 = vld [vmem:[#allocation2 + $0x210] sm:$0xf]
    %v106 = vld [vmem:[#allocation2 + $0x218] sm:$0xf]
    %v107 = vld [vmem:[#allocation2 + $0x220] sm:$0xf]
    %v108 = vld [vmem:[#allocation2 + $0x228] sm:$0xf]
    %v109 = vld [vmem:[#allocation2 + $0x230] sm:$0xf]
    %v110 = vld [vmem:[#allocation2 + $0x238] sm:$0xf]
    %v111 = vld [vmem:[#allocation2 + $0x240] sm:$0xf]
    %v112 = vld [vmem:[#allocation2 + $0x248] sm:$0xf]
    %v113 = vld [vmem:[#allocation2 + $0x250] sm:$0xf]
    %v114 = vld [vmem:[#allocation2 + $0x258] sm:$0xf]
    %v115 = vld [vmem:[#allocation2 + $0x260] sm:$0xf]
    %v116 = vld [vmem:[#allocation2 + $0x268] sm:$0xf]
    %v117 = vld [vmem:[#allocation2 + $0x270] sm:$0xf]
    %v118 = vld [vmem:[#allocation2 + $0x278] sm:$0xf]
    %v119 = vld [vmem:[%s3] sm:$0xff]
    %v120 = vld [vmem:[%s3 + $0x8] sm:$0xff]
    %122 = vset.pattern.permute.xlu0 0
    %123 = vperm.xlu0 %122, %v119
    %v124 = vpop.permute.xlu0 %123
    %127 = vset.pattern.permute.xlu0 0
    %128 = vperm.xlu0 %127, %v120
    %v129 = vpop.permute.xlu0 %128
    %vm131 = vcmask 293888
    %v133 = vsel %vm131, %v37, 0
    %v136 = vsel %vm131, %v38, 0
    %vm138 = vcmask 1043456
    %v140 = vsel %vm138, %v103, 0
    %v143 = vsel %vm138, %v104, 0
    %v146 = vsel %vm138, %v105, 0
    %v149 = vsel %vm138, %v106, 0
    %v152 = vsel %vm138, %v107, 0
    %v155 = vsel %vm138, %v108, 0
    %v158 = vsel %vm138, %v109, 0
    %v161 = vsel %vm138, %v110, 0
    %v164 = vsel %vm138, %v111, 0
    %v167 = vsel %vm138, %v112, 0
    %v170 = vsel %vm138, %v113, 0
    %v173 = vsel %vm138, %v114, 0
    %v176 = vsel %vm138, %v115, 0
    %v179 = vsel %vm138, %v116, 0
    %v182 = vsel %vm138, %v117, 0
    %v185 = vsel %vm138, %v118, 0
    %187 = vmatprep.subr.mxu0 %v40
    %188 = vmatpush1.msra.mxu0 %v39
    %189 = vmatprep.subr.mxu0 %v56
    %190 = vmatpush1.msra.mxu0 %v55
    %191 = vmatprep.subr.mxu0 %v72
    %192 = vmatpush1.msra.mxu0 %v71
    %193 = vmatprep.subr.mxu0 %v88
    %194 = vmatpush1.msra.mxu0 %v87
    %195 = vmatprep.subr.mxu0 %v143
    %196 = vmatpush1.msra.mxu0 %v140
    %197 = vmatprep.subr.mxu0 0.0
    %198 = vmatpush1.msra.mxu0 0.0
    %199 = vmatprep.subr.mxu0 0.0
    %200 = vmatpush1.msra.mxu0 0.0
    %201 = vmatprep.subr.mxu0 0.0
    %202 = vmatpush1.msra.mxu0 0.0
    %203 = vmatprep.subr.mxu0 0.0
    %204 = vmatpush1.msra.mxu0 0.0
    %205 = vmatprep.subr.mxu0 0.0
    %206 = vmatpush1.msra.mxu0 0.0
    %207 = vmatprep.subr.mxu0 0.0
    %208 = vmatpush1.msra.mxu0 0.0
    %209 = vmatprep.subr.mxu0 0.0
    %210 = vmatpush1.msra.mxu0 0.0
    %211 = vmatprep.subr.mxu0 0.0
    %212 = vmatpush1.msra.mxu0 0.0
    %213 = vmatprep.subr.mxu0 0.0
    %214 = vmatpush1.msra.mxu0 0.0
    %215 = vmatprep.subr.mxu0 0.0
    %216 = vmatpush1.msra.mxu0 0.0
    %217 = vmatprep.subr.mxu0 0.0
    %218 = vmatpush1.msra.mxu0 0.0
    %219 = vmatprep.subr.mxu0 0.0
    %220 = vmatpush1.msra.mxu0 0.0
    %221 = vmatprep.subr.mxu0 0.0
    %222 = vmatpush1.msra.mxu0 0.0
    %223 = vmatprep.subr.mxu0 0.0
    %224 = vmatpush1.msra.mxu0 0.0
    %225 = vmatprep.subr.mxu0 0.0
    %226 = vmatpush1.msra.mxu0 0.0
    %227 = vmatprep.subr.mxu0 0.0
    %228 = vmatpush1.msra.mxu0 0.0
    %229 = vmatprep.subr.mxu0 0.0
    %230 = vmatpush1.msra.mxu0 0.0
    %231 = vmatprep.subr.mxu0 0.0
    %232 = vmatpush1.msra.mxu0 0.0
    %233 = vmatprep.subr.mxu0 0.0
    %234 = vmatpush1.msra.mxu0 0.0
    %235 = vmatprep.subr.mxu0 0.0
    %236 = vmatpush1.msra.mxu0 0.0
    %237 = vmatprep.subr.mxu0 0.0
    %238 = vmatpush1.msra.mxu0 0.0
    %239 = vmatprep.subr.mxu0 0.0
    %240 = vmatpush1.msra.mxu0 0.0
    %241 = vmatprep.subr.mxu0 0.0
    %242 = vmatpush1.msra.mxu0 0.0
    %243 = vmatprep.subr.mxu0 0.0
    %244 = vmatpush1.msra.mxu0 0.0
    %245 = vmatprep.subr.mxu0 0.0
    %246 = vmatpush1.msra.mxu0 0.0
    %247 = vmatprep.subr.mxu0 0.0
    %248 = vmatpush1.msra.mxu0 0.0
    %249 = vmatprep.subr.mxu0 0.0
    %250 = vmatpush1.msra.mxu0 0.0
    %251 = vmatprep.mubr.f32.mxu0 0.0
    %252 = vmatmul.mubr.f32.gmra.mrb[0].mxu0 %v133
    %v253 = vpop.f32.mrb[0].mxu0
    %v254 = vadd.f32 %v124, %v253
    %v255 = vpop.f32.mrb[0].mxu0
    %v256 = vadd.f32 %v124, %v255
    %257 = vmatprep.mubr.f32.mxu0 0.0
    %258 = vmatmul.mubr.f32.gmra.mrb[0].mxu0 %v136
    %v259 = vpop.f32.mrb[0].mxu0
    %v260 = vadd.f32 %v129, %v259
    %v261 = vpop.f32.mrb[0].mxu0
    %v262 = vadd.f32 %v129, %v261
    %263 = vdwg.mxu0
    %264 = vmatprep.subr.mxu0 %v42
    %265 = vmatpush1.msra.mxu0 %v41
    %266 = vmatprep.subr.mxu0 %v58
    %267 = vmatpush1.msra.mxu0 %v57
    %268 = vmatprep.subr.mxu0 %v74
    %269 = vmatpush1.msra.mxu0 %v73
    %270 = vmatprep.subr.mxu0 %v90
    %271 = vmatpush1.msra.mxu0 %v89
    %272 = vmatprep.subr.mxu0 %v149
    %273 = vmatpush1.msra.mxu0 %v146
    %274 = vmatprep.subr.mxu0 0.0
    %275 = vmatpush1.msra.mxu0 0.0
    %276 = vmatprep.subr.mxu0 0.0
    %277 = vmatpush1.msra.mxu0 0.0
    %278 = vmatprep.subr.mxu0 0.0
    %279 = vmatpush1.msra.mxu0 0.0
    %280 = vmatprep.subr.mxu0 0.0
    %281 = vmatpush1.msra.mxu0 0.0
    %282 = vmatprep.subr.mxu0 0.0
    %283 = vmatpush1.msra.mxu0 0.0
    %284 = vmatprep.subr.mxu0 0.0
    %285 = vmatpush1.msra.mxu0 0.0
    %286 = vmatprep.subr.mxu0 0.0
    %287 = vmatpush1.msra.mxu0 0.0
    %288 = vmatprep.subr.mxu0 0.0
    %289 = vmatpush1.msra.mxu0 0.0
    %290 = vmatprep.subr.mxu0 0.0
    %291 = vmatpush1.msra.mxu0 0.0
    %292 = vmatprep.subr.mxu0 0.0
    %293 = vmatpush1.msra.mxu0 0.0
    %294 = vmatprep.subr.mxu0 0.0
    %295 = vmatpush1.msra.mxu0 0.0
    %296 = vmatprep.subr.mxu0 0.0
    %297 = vmatpush1.msra.mxu0 0.0
    %298 = vmatprep.subr.mxu0 0.0
    %299 = vmatpush1.msra.mxu0 0.0
    %300 = vmatprep.subr.mxu0 0.0
    %301 = vmatpush1.msra.mxu0 0.0
    %302 = vmatprep.subr.mxu0 0.0
    %303 = vmatpush1.msra.mxu0 0.0
    %304 = vmatprep.subr.mxu0 0.0
    %305 = vmatpush1.msra.mxu0 0.0
    %306 = vmatprep.subr.mxu0 0.0
    %307 = vmatpush1.msra.mxu0 0.0
    %308 = vmatprep.subr.mxu0 0.0
    %309 = vmatpush1.msra.mxu0 0.0
    %310 = vmatprep.subr.mxu0 0.0
    %311 = vmatpush1.msra.mxu0 0.0
    %312 = vmatprep.subr.mxu0 0.0
    %313 = vmatpush1.msra.mxu0 0.0
    %314 = vmatprep.subr.mxu0 0.0
    %315 = vmatpush1.msra.mxu0 0.0
    %316 = vmatprep.subr.mxu0 0.0
    %317 = vmatpush1.msra.mxu0 0.0
    %318 = vmatprep.subr.mxu0 0.0
    %319 = vmatpush1.msra.mxu0 0.0
    %320 = vmatprep.subr.mxu0 0.0
    %321 = vmatpush1.msra.mxu0 0.0
    %322 = vmatprep.subr.mxu0 0.0
    %323 = vmatpush1.msra.mxu0 0.0
    %324 = vmatprep.subr.mxu0 0.0
    %325 = vmatpush1.msra.mxu0 0.0
    %326 = vmatprep.subr.mxu0 0.0
    %327 = vmatpush1.msra.mxu0 0.0
    %328 = vmatprep.mubr.f32.mxu0 0.0
    %329 = vmatmul.mubr.f32.gmra.mrb[0].mxu0 %v133
    %v330 = vpop.f32.mrb[0].mxu0
    %v331 = vadd.f32 %v124, %v330
    %v332 = vpop.f32.mrb[0].mxu0
    %v333 = vadd.f32 %v124, %v332
    %334 = vmatprep.mubr.f32.mxu0 0.0
    %335 = vmatmul.mubr.f32.gmra.mrb[0].mxu0 %v136
    %v336 = vpop.f32.mrb[0].mxu0
    %v337 = vadd.f32 %v129, %v336
    %v338 = vpop.f32.mrb[0].mxu0
    %v339 = vadd.f32 %v129, %v338
    %340 = vdwg.mxu0
    %341 = vmatprep.subr.mxu0 %v44
    %342 = vmatpush1.msra.mxu0 %v43
    %343 = vmatprep.subr.mxu0 %v60
    %344 = vmatpush1.msra.mxu0 %v59
    %345 = vmatprep.subr.mxu0 %v76
    %346 = vmatpush1.msra.mxu0 %v75
    %347 = vmatprep.subr.mxu0 %v92
    %348 = vmatpush1.msra.mxu0 %v91
    %349 = vmatprep.subr.mxu0 %v155
    %350 = vmatpush1.msra.mxu0 %v152
    %351 = vmatprep.subr.mxu0 0.0
    %352 = vmatpush1.msra.mxu0 0.0
    %353 = vmatprep.subr.mxu0 0.0
    %354 = vmatpush1.msra.mxu0 0.0
    %355 = vmatprep.subr.mxu0 0.0
    %356 = vmatpush1.msra.mxu0 0.0
    %357 = vmatprep.subr.mxu0 0.0
    %358 = vmatpush1.msra.mxu0 0.0
    %359 = vmatprep.subr.mxu0 0.0
    %360 = vmatpush1.msra.mxu0 0.0
    %361 = vmatprep.subr.mxu0 0.0
    %362 = vmatpush1.msra.mxu0 0.0
    %363 = vmatprep.subr.mxu0 0.0
    %364 = vmatpush1.msra.mxu0 0.0
    %365 = vmatprep.subr.mxu0 0.0
    %366 = vmatpush1.msra.mxu0 0.0
    %367 = vmatprep.subr.mxu0 0.0
    %368 = vmatpush1.msra.mxu0 0.0
    %369 = vmatprep.subr.mxu0 0.0
    %370 = vmatpush1.msra.mxu0 0.0
    %371 = vmatprep.subr.mxu0 0.0
    %372 = vmatpush1.msra.mxu0 0.0
    %373 = vmatprep.subr.mxu0 0.0
    %374 = vmatpush1.msra.mxu0 0.0
    %375 = vmatprep.subr.mxu0 0.0
    %376 = vmatpush1.msra.mxu0 0.0
    %377 = vmatprep.subr.mxu0 0.0
    %378 = vmatpush1.msra.mxu0 0.0
    %379 = vmatprep.subr.mxu0 0.0
    %380 = vmatpush1.msra.mxu0 0.0
    %381 = vmatprep.subr.mxu0 0.0
    %382 = vmatpush1.msra.mxu0 0.0
    %383 = vmatprep.subr.mxu0 0.0
    %384 = vmatpush1.msra.mxu0 0.0
    %385 = vmatprep.subr.mxu0 0.0
    %386 = vmatpush1.msra.mxu0 0.0
    %387 = vmatprep.subr.mxu0 0.0
    %388 = vmatpush1.msra.mxu0 0.0
    %389 = vmatprep.subr.mxu0 0.0
    %390 = vmatpush1.msra.mxu0 0.0
    %391 = vmatprep.subr.mxu0 0.0
    %392 = vmatpush1.msra.mxu0 0.0
    %393 = vmatprep.subr.mxu0 0.0
    %394 = vmatpush1.msra.mxu0 0.0
    %395 = vmatprep.subr.mxu0 0.0
    %396 = vmatpush1.msra.mxu0 0.0
    %397 = vmatprep.subr.mxu0 0.0
    %398 = vmatpush1.msra.mxu0 0.0
    %399 = vmatprep.subr.mxu0 0.0
    %400 = vmatpush1.msra.mxu0 0.0
    %401 = vmatprep.subr.mxu0 0.0
    %402 = vmatpush1.msra.mxu0 0.0
    %403 = vmatprep.subr.mxu0 0.0
    %404 = vmatpush1.msra.mxu0 0.0
    %405 = vmatprep.mubr.f32.mxu0 0.0
    %406 = vmatmul.mubr.f32.gmra.mrb[0].mxu0 %v133
    %v407 = vpop.f32.mrb[0].mxu0
    %v408 = vadd.f32 %v124, %v407
    %v409 = vpop.f32.mrb[0].mxu0
    %v410 = vadd.f32 %v124, %v409
    %411 = vmatprep.mubr.f32.mxu0 0.0
    %412 = vmatmul.mubr.f32.gmra.mrb[0].mxu0 %v136
    %v413 = vpop.f32.mrb[0].mxu0
    %v414 = vadd.f32 %v129, %v413
    %v415 = vpop.f32.mrb[0].mxu0
    %v416 = vadd.f32 %v129, %v415
    %417 = vdwg.mxu0
    %418 = vmatprep.subr.mxu0 %v46
    %419 = vmatpush1.msra.mxu0 %v45
    %420 = vmatprep.subr.mxu0 %v62
    %421 = vmatpush1.msra.mxu0 %v61
    %422 = vmatprep.subr.mxu0 %v78
    %423 = vmatpush1.msra.mxu0 %v77
    %424 = vmatprep.subr.mxu0 %v94
    %425 = vmatpush1.msra.mxu0 %v93
    %426 = vmatprep.subr.mxu0 %v161
    %427 = vmatpush1.msra.mxu0 %v158
    %428 = vmatprep.subr.mxu0 0.0
    %429 = vmatpush1.msra.mxu0 0.0
    %430 = vmatprep.subr.mxu0 0.0
    %431 = vmatpush1.msra.mxu0 0.0
    %432 = vmatprep.subr.mxu0 0.0
    %433 = vmatpush1.msra.mxu0 0.0
    %434 = vmatprep.subr.mxu0 0.0
    %435 = vmatpush1.msra.mxu0 0.0
    %436 = vmatprep.subr.mxu0 0.0
    %437 = vmatpush1.msra.mxu0 0.0
    %438 = vmatprep.subr.mxu0 0.0
    %439 = vmatpush1.msra.mxu0 0.0
    %440 = vmatprep.subr.mxu0 0.0
    %441 = vmatpush1.msra.mxu0 0.0
    %442 = vmatprep.subr.mxu0 0.0
    %443 = vmatpush1.msra.mxu0 0.0
    %444 = vmatprep.subr.mxu0 0.0
    %445 = vmatpush1.msra.mxu0 0.0
    %446 = vmatprep.subr.mxu0 0.0
    %447 = vmatpush1.msra.mxu0 0.0
    %448 = vmatprep.subr.mxu0 0.0
    %449 = vmatpush1.msra.mxu0 0.0
    %450 = vmatprep.subr.mxu0 0.0
    %451 = vmatpush1.msra.mxu0 0.0
    %452 = vmatprep.subr.mxu0 0.0
    %453 = vmatpush1.msra.mxu0 0.0
    %454 = vmatprep.subr.mxu0 0.0
    %455 = vmatpush1.msra.mxu0 0.0
    %456 = vmatprep.subr.mxu0 0.0
    %457 = vmatpush1.msra.mxu0 0.0
    %458 = vmatprep.subr.mxu0 0.0
    %459 = vmatpush1.msra.mxu0 0.0
    %460 = vmatprep.subr.mxu0 0.0
    %461 = vmatpush1.msra.mxu0 0.0
    %462 = vmatprep.subr.mxu0 0.0
    %463 = vmatpush1.msra.mxu0 0.0
    %464 = vmatprep.subr.mxu0 0.0
    %465 = vmatpush1.msra.mxu0 0.0
    %466 = vmatprep.subr.mxu0 0.0
    %467 = vmatpush1.msra.mxu0 0.0
    %468 = vmatprep.subr.mxu0 0.0
    %469 = vmatpush1.msra.mxu0 0.0
    %470 = vmatprep.subr.mxu0 0.0
    %471 = vmatpush1.msra.mxu0 0.0
    %472 = vmatprep.subr.mxu0 0.0
    %473 = vmatpush1.msra.mxu0 0.0
    %474 = vmatprep.subr.mxu0 0.0
    %475 = vmatpush1.msra.mxu0 0.0
    %476 = vmatprep.subr.mxu0 0.0
    %477 = vmatpush1.msra.mxu0 0.0
    %478 = vmatprep.subr.mxu0 0.0
    %479 = vmatpush1.msra.mxu0 0.0
    %480 = vmatprep.subr.mxu0 0.0
    %481 = vmatpush1.msra.mxu0 0.0
    %482 = vmatprep.mubr.f32.mxu0 0.0
    %483 = vmatmul.mubr.f32.gmra.mrb[0].mxu0 %v133
    %v484 = vpop.f32.mrb[0].mxu0
    %v485 = vadd.f32 %v124, %v484
    %v486 = vpop.f32.mrb[0].mxu0
    %v487 = vadd.f32 %v124, %v486
    %488 = vmatprep.mubr.f32.mxu0 0.0
    %489 = vmatmul.mubr.f32.gmra.mrb[0].mxu0 %v136
    %v490 = vpop.f32.mrb[0].mxu0
    %v491 = vadd.f32 %v129, %v490
    %v492 = vpop.f32.mrb[0].mxu0
    %v493 = vadd.f32 %v129, %v492
    %494 = vdwg.mxu0
    %495 = vmatprep.subr.mxu0 %v48
    %496 = vmatpush1.msra.mxu0 %v47
    %497 = vmatprep.subr.mxu0 %v64
    %498 = vmatpush1.msra.mxu0 %v63
    %499 = vmatprep.subr.mxu0 %v80
    %500 = vmatpush1.msra.mxu0 %v79
    %501 = vmatprep.subr.mxu0 %v96
    %502 = vmatpush1.msra.mxu0 %v95
    %503 = vmatprep.subr.mxu0 %v167
    %504 = vmatpush1.msra.mxu0 %v164
    %505 = vmatprep.subr.mxu0 0.0
    %506 = vmatpush1.msra.mxu0 0.0
    %507 = vmatprep.subr.mxu0 0.0
    %508 = vmatpush1.msra.mxu0 0.0
    %509 = vmatprep.subr.mxu0 0.0
    %510 = vmatpush1.msra.mxu0 0.0
    %511 = vmatprep.subr.mxu0 0.0
    %512 = vmatpush1.msra.mxu0 0.0
    %513 = vmatprep.subr.mxu0 0.0
    %514 = vmatpush1.msra.mxu0 0.0
    %515 = vmatprep.subr.mxu0 0.0
    %516 = vmatpush1.msra.mxu0 0.0
    %517 = vmatprep.subr.mxu0 0.0
    %518 = vmatpush1.msra.mxu0 0.0
    %519 = vmatprep.subr.mxu0 0.0
    %520 = vmatpush1.msra.mxu0 0.0
    %521 = vmatprep.subr.mxu0 0.0
    %522 = vmatpush1.msra.mxu0 0.0
    %523 = vmatprep.subr.mxu0 0.0
    %524 = vmatpush1.msra.mxu0 0.0
    %525 = vmatprep.subr.mxu0 0.0
    %526 = vmatpush1.msra.mxu0 0.0
    %527 = vmatprep.subr.mxu0 0.0
    %528 = vmatpush1.msra.mxu0 0.0
    %529 = vmatprep.subr.mxu0 0.0
    %530 = vmatpush1.msra.mxu0 0.0
    %531 = vmatprep.subr.mxu0 0.0
    %532 = vmatpush1.msra.mxu0 0.0
    %533 = vmatprep.subr.mxu0 0.0
    %534 = vmatpush1.msra.mxu0 0.0
    %535 = vmatprep.subr.mxu0 0.0
    %536 = vmatpush1.msra.mxu0 0.0
    %537 = vmatprep.subr.mxu0 0.0
    %538 = vmatpush1.msra.mxu0 0.0
    %539 = vmatprep.subr.mxu0 0.0
    %540 = vmatpush1.msra.mxu0 0.0
    %541 = vmatprep.subr.mxu0 0.0
    %542 = vmatpush1.msra.mxu0 0.0
    %543 = vmatprep.subr.mxu0 0.0
    %544 = vmatpush1.msra.mxu0 0.0
    %545 = vmatprep.subr.mxu0 0.0
    %546 = vmatpush1.msra.mxu0 0.0
    %547 = vmatprep.subr.mxu0 0.0
    %548 = vmatpush1.msra.mxu0 0.0
    %549 = vmatprep.subr.mxu0 0.0
    %550 = vmatpush1.msra.mxu0 0.0
    %551 = vmatprep.subr.mxu0 0.0
    %552 = vmatpush1.msra.mxu0 0.0
    %553 = vmatprep.subr.mxu0 0.0
    %554 = vmatpush1.msra.mxu0 0.0
    %555 = vmatprep.subr.mxu0 0.0
    %556 = vmatpush1.msra.mxu0 0.0
    %557 = vmatprep.subr.mxu0 0.0
    %558 = vmatpush1.msra.mxu0 0.0
    %559 = vmatprep.mubr.f32.mxu0 0.0
    %560 = vmatmul.mubr.f32.gmra.mrb[0].mxu0 %v133
    %v561 = vpop.f32.mrb[0].mxu0
    %v562 = vadd.f32 %v124, %v561
    %v563 = vpop.f32.mrb[0].mxu0
    %v564 = vadd.f32 %v124, %v563
    %565 = vmatprep.mubr.f32.mxu0 0.0
    %566 = vmatmul.mubr.f32.gmra.mrb[0].mxu0 %v136
    %v567 = vpop.f32.mrb[0].mxu0
    %v568 = vadd.f32 %v129, %v567
    %v569 = vpop.f32.mrb[0].mxu0
    %v570 = vadd.f32 %v129, %v569
    %571 = vdwg.mxu0
    %572 = vmatprep.subr.mxu0 %v50
    %573 = vmatpush1.msra.mxu0 %v49
    %574 = vmatprep.subr.mxu0 %v66
    %575 = vmatpush1.msra.mxu0 %v65
    %576 = vmatprep.subr.mxu0 %v82
    %577 = vmatpush1.msra.mxu0 %v81
    %578 = vmatprep.subr.mxu0 %v98
    %579 = vmatpush1.msra.mxu0 %v97
    %580 = vmatprep.subr.mxu0 %v173
    %581 = vmatpush1.msra.mxu0 %v170
    %582 = vmatprep.subr.mxu0 0.0
    %583 = vmatpush1.msra.mxu0 0.0
    %584 = vmatprep.subr.mxu0 0.0
    %585 = vmatpush1.msra.mxu0 0.0
    %586 = vmatprep.subr.mxu0 0.0
    %587 = vmatpush1.msra.mxu0 0.0
    %588 = vmatprep.subr.mxu0 0.0
    %589 = vmatpush1.msra.mxu0 0.0
    %590 = vmatprep.subr.mxu0 0.0
    %591 = vmatpush1.msra.mxu0 0.0
    %592 = vmatprep.subr.mxu0 0.0
    %593 = vmatpush1.msra.mxu0 0.0
    %594 = vmatprep.subr.mxu0 0.0
    %595 = vmatpush1.msra.mxu0 0.0
    %596 = vmatprep.subr.mxu0 0.0
    %597 = vmatpush1.msra.mxu0 0.0
    %598 = vmatprep.subr.mxu0 0.0
    %599 = vmatpush1.msra.mxu0 0.0
    %600 = vmatprep.subr.mxu0 0.0
    %601 = vmatpush1.msra.mxu0 0.0
    %602 = vmatprep.subr.mxu0 0.0
    %603 = vmatpush1.msra.mxu0 0.0
    %604 = vmatprep.subr.mxu0 0.0
    %605 = vmatpush1.msra.mxu0 0.0
    %606 = vmatprep.subr.mxu0 0.0
    %607 = vmatpush1.msra.mxu0 0.0
    %608 = vmatprep.subr.mxu0 0.0
    %609 = vmatpush1.msra.mxu0 0.0
    %610 = vmatprep.subr.mxu0 0.0
    %611 = vmatpush1.msra.mxu0 0.0
    %612 = vmatprep.subr.mxu0 0.0
    %613 = vmatpush1.msra.mxu0 0.0
    %614 = vmatprep.subr.mxu0 0.0
    %615 = vmatpush1.msra.mxu0 0.0
    %616 = vmatprep.subr.mxu0 0.0
    %617 = vmatpush1.msra.mxu0 0.0
    %618 = vmatprep.subr.mxu0 0.0
    %619 = vmatpush1.msra.mxu0 0.0
    %620 = vmatprep.subr.mxu0 0.0
    %621 = vmatpush1.msra.mxu0 0.0
    %622 = vmatprep.subr.mxu0 0.0
    %623 = vmatpush1.msra.mxu0 0.0
    %624 = vmatprep.subr.mxu0 0.0
    %625 = vmatpush1.msra.mxu0 0.0
    %626 = vmatprep.subr.mxu0 0.0
    %627 = vmatpush1.msra.mxu0 0.0
    %628 = vmatprep.subr.mxu0 0.0
    %629 = vmatpush1.msra.mxu0 0.0
    %630 = vmatprep.subr.mxu0 0.0
    %631 = vmatpush1.msra.mxu0 0.0
    %632 = vmatprep.subr.mxu0 0.0
    %633 = vmatpush1.msra.mxu0 0.0
    %634 = vmatprep.subr.mxu0 0.0
    %635 = vmatpush1.msra.mxu0 0.0
    %636 = vmatprep.mubr.f32.mxu0 0.0
    %637 = vmatmul.mubr.f32.gmra.mrb[0].mxu0 %v133
    %v638 = vpop.f32.mrb[0].mxu0
    %v639 = vadd.f32 %v124, %v638
    %v640 = vpop.f32.mrb[0].mxu0
    %v641 = vadd.f32 %v124, %v640
    %642 = vmatprep.mubr.f32.mxu0 0.0
    %643 = vmatmul.mubr.f32.gmra.mrb[0].mxu0 %v136
    %v644 = vpop.f32.mrb[0].mxu0
    %v645 = vadd.f32 %v129, %v644
    %v646 = vpop.f32.mrb[0].mxu0
    %v647 = vadd.f32 %v129, %v646
    %648 = vdwg.mxu0
    %649 = vmatprep.subr.mxu0 %v52
    %650 = vmatpush1.msra.mxu0 %v51
    %651 = vmatprep.subr.mxu0 %v68
    %652 = vmatpush1.msra.mxu0 %v67
    %653 = vmatprep.subr.mxu0 %v84
    %654 = vmatpush1.msra.mxu0 %v83
    %655 = vmatprep.subr.mxu0 %v100
    %656 = vmatpush1.msra.mxu0 %v99
    %657 = vmatprep.subr.mxu0 %v179
    %658 = vmatpush1.msra.mxu0 %v176
    %659 = vmatprep.subr.mxu0 0.0
    %660 = vmatpush1.msra.mxu0 0.0
    %661 = vmatprep.subr.mxu0 0.0
    %662 = vmatpush1.msra.mxu0 0.0
    %663 = vmatprep.subr.mxu0 0.0
    %664 = vmatpush1.msra.mxu0 0.0
    %665 = vmatprep.subr.mxu0 0.0
    %666 = vmatpush1.msra.mxu0 0.0
    %667 = vmatprep.subr.mxu0 0.0
    %668 = vmatpush1.msra.mxu0 0.0
    %669 = vmatprep.subr.mxu0 0.0
    %670 = vmatpush1.msra.mxu0 0.0
    %671 = vmatprep.subr.mxu0 0.0
    %672 = vmatpush1.msra.mxu0 0.0
    %673 = vmatprep.subr.mxu0 0.0
    %674 = vmatpush1.msra.mxu0 0.0
    %675 = vmatprep.subr.mxu0 0.0
    %676 = vmatpush1.msra.mxu0 0.0
    %677 = vmatprep.subr.mxu0 0.0
    %678 = vmatpush1.msra.mxu0 0.0
    %679 = vmatprep.subr.mxu0 0.0
    %680 = vmatpush1.msra.mxu0 0.0
    %681 = vmatprep.subr.mxu0 0.0
    %682 = vmatpush1.msra.mxu0 0.0
    %683 = vmatprep.subr.mxu0 0.0
    %684 = vmatpush1.msra.mxu0 0.0
    %685 = vmatprep.subr.mxu0 0.0
    %686 = vmatpush1.msra.mxu0 0.0
    %687 = vmatprep.subr.mxu0 0.0
    %688 = vmatpush1.msra.mxu0 0.0
    %689 = vmatprep.subr.mxu0 0.0
    %690 = vmatpush1.msra.mxu0 0.0
    %691 = vmatprep.subr.mxu0 0.0
    %692 = vmatpush1.msra.mxu0 0.0
    %693 = vmatprep.subr.mxu0 0.0
    %694 = vmatpush1.msra.mxu0 0.0
    %695 = vmatprep.subr.mxu0 0.0
    %696 = vmatpush1.msra.mxu0 0.0
    %697 = vmatprep.subr.mxu0 0.0
    %698 = vmatpush1.msra.mxu0 0.0
    %699 = vmatprep.subr.mxu0 0.0
    %700 = vmatpush1.msra.mxu0 0.0
    %701 = vmatprep.subr.mxu0 0.0
    %702 = vmatpush1.msra.mxu0 0.0
    %703 = vmatprep.subr.mxu0 0.0
    %704 = vmatpush1.msra.mxu0 0.0
    %705 = vmatprep.subr.mxu0 0.0
    %706 = vmatpush1.msra.mxu0 0.0
    %707 = vmatprep.subr.mxu0 0.0
    %708 = vmatpush1.msra.mxu0 0.0
    %709 = vmatprep.subr.mxu0 0.0
    %710 = vmatpush1.msra.mxu0 0.0
    %711 = vmatprep.subr.mxu0 0.0
    %712 = vmatpush1.msra.mxu0 0.0
    %713 = vmatprep.mubr.f32.mxu0 0.0
    %714 = vmatmul.mubr.f32.gmra.mrb[0].mxu0 %v133
    %v715 = vpop.f32.mrb[0].mxu0
    %v716 = vadd.f32 %v124, %v715
    %v717 = vpop.f32.mrb[0].mxu0
    %v718 = vadd.f32 %v124, %v717
    %719 = vmatprep.mubr.f32.mxu0 0.0
    %720 = vmatmul.mubr.f32.gmra.mrb[0].mxu0 %v136
    %v721 = vpop.f32.mrb[0].mxu0
    %v722 = vadd.f32 %v129, %v721
    %v723 = vpop.f32.mrb[0].mxu0
    %v724 = vadd.f32 %v129, %v723
    %725 = vdwg.mxu0
    %726 = vmatprep.subr.mxu0 %v54
    %727 = vmatpush1.msra.mxu0 %v53
    %728 = vmatprep.subr.mxu0 %v70
    %729 = vmatpush1.msra.mxu0 %v69
    %730 = vmatprep.subr.mxu0 %v86
    %731 = vmatpush1.msra.mxu0 %v85
    %732 = vmatprep.subr.mxu0 %v102
    %733 = vmatpush1.msra.mxu0 %v101
    %734 = vmatprep.subr.mxu0 %v185
    %735 = vmatpush1.msra.mxu0 %v182
    %736 = vmatprep.subr.mxu0 0.0
    %737 = vmatpush1.msra.mxu0 0.0
    %738 = vmatprep.subr.mxu0 0.0
    %739 = vmatpush1.msra.mxu0 0.0
    %740 = vmatprep.subr.mxu0 0.0
    %741 = vmatpush1.msra.mxu0 0.0
    %742 = vmatprep.subr.mxu0 0.0
    %743 = vmatpush1.msra.mxu0 0.0
    %744 = vmatprep.subr.mxu0 0.0
    %745 = vmatpush1.msra.mxu0 0.0
    %746 = vmatprep.subr.mxu0 0.0
    %747 = vmatpush1.msra.mxu0 0.0
    %748 = vmatprep.subr.mxu0 0.0
    %749 = vmatpush1.msra.mxu0 0.0
    %750 = vmatprep.subr.mxu0 0.0
    %751 = vmatpush1.msra.mxu0 0.0
    %752 = vmatprep.subr.mxu0 0.0
    %753 = vmatpush1.msra.mxu0 0.0
    %754 = vmatprep.subr.mxu0 0.0
    %755 = vmatpush1.msra.mxu0 0.0
    %756 = vmatprep.subr.mxu0 0.0
    %757 = vmatpush1.msra.mxu0 0.0
    %758 = vmatprep.subr.mxu0 0.0
    %759 = vmatpush1.msra.mxu0 0.0
    %760 = vmatprep.subr.mxu0 0.0
    %761 = vmatpush1.msra.mxu0 0.0
    %762 = vmatprep.subr.mxu0 0.0
    %763 = vmatpush1.msra.mxu0 0.0
    %764 = vmatprep.subr.mxu0 0.0
    %765 = vmatpush1.msra.mxu0 0.0
    %766 = vmatprep.subr.mxu0 0.0
    %767 = vmatpush1.msra.mxu0 0.0
    %768 = vmatprep.subr.mxu0 0.0
    %769 = vmatpush1.msra.mxu0 0.0
    %770 = vmatprep.subr.mxu0 0.0
    %771 = vmatpush1.msra.mxu0 0.0
    %772 = vmatprep.subr.mxu0 0.0
    %773 = vmatpush1.msra.mxu0 0.0
    %774 = vmatprep.subr.mxu0 0.0
    %775 = vmatpush1.msra.mxu0 0.0
    %776 = vmatprep.subr.mxu0 0.0
    %777 = vmatpush1.msra.mxu0 0.0
    %778 = vmatprep.subr.mxu0 0.0
    %779 = vmatpush1.msra.mxu0 0.0
    %780 = vmatprep.subr.mxu0 0.0
    %781 = vmatpush1.msra.mxu0 0.0
    %782 = vmatprep.subr.mxu0 0.0
    %783 = vmatpush1.msra.mxu0 0.0
    %784 = vmatprep.subr.mxu0 0.0
    %785 = vmatpush1.msra.mxu0 0.0
    %786 = vmatprep.subr.mxu0 0.0
    %787 = vmatpush1.msra.mxu0 0.0
    %788 = vmatprep.subr.mxu0 0.0
    %789 = vmatpush1.msra.mxu0 0.0
    %790 = vmatprep.mubr.f32.mxu0 0.0
    %791 = vmatmul.mubr.f32.gmra.mrb[0].mxu0 %v133
    %v792 = vpop.f32.mrb[0].mxu0
    %v793 = vadd.f32 %v124, %v792
    %v794 = vpop.f32.mrb[0].mxu0
    %v795 = vadd.f32 %v124, %v794
    %796 = vmatprep.mubr.f32.mxu0 0.0
    %797 = vmatmul.mubr.f32.gmra.mrb[0].mxu0 %v136
    %v798 = vpop.f32.mrb[0].mxu0
    %v799 = vadd.f32 %v129, %v798
    %v800 = vpop.f32.mrb[0].mxu0
    %v801 = vadd.f32 %v129, %v800
    %802 = vdwg.mxu0
    %v803 = vmax.f32 %v254, 0.0
    %v804 = vmax.f32 %v256, 0.0
    %v805 = vmax.f32 %v331, 0.0
    %v806 = vmax.f32 %v333, 0.0
    %v807 = vmax.f32 %v408, 0.0
    %v808 = vmax.f32 %v410, 0.0
    %v809 = vmax.f32 %v485, 0.0
    %v810 = vmax.f32 %v487, 0.0
    %v811 = vmax.f32 %v562, 0.0
    %v812 = vmax.f32 %v564, 0.0
    %v813 = vmax.f32 %v639, 0.0
    %v814 = vmax.f32 %v641, 0.0
    %v815 = vmax.f32 %v716, 0.0
    %v816 = vmax.f32 %v718, 0.0
    %v817 = vmax.f32 %v793, 0.0
    %v818 = vmax.f32 %v795, 0.0
    %v819 = vmax.f32 %v260, 0.0
    %v820 = vmax.f32 %v262, 0.0
    %v821 = vmax.f32 %v337, 0.0
    %v822 = vmax.f32 %v339, 0.0
    %v823 = vmax.f32 %v414, 0.0
    %v824 = vmax.f32 %v416, 0.0
    %v825 = vmax.f32 %v491, 0.0
    %v826 = vmax.f32 %v493, 0.0
    %v827 = vmax.f32 %v568, 0.0
    %v828 = vmax.f32 %v570, 0.0
    %v829 = vmax.f32 %v645, 0.0
    %v830 = vmax.f32 %v647, 0.0
    %v831 = vmax.f32 %v722, 0.0
    %v832 = vmax.f32 %v724, 0.0
    %v833 = vmax.f32 %v799, 0.0
    %v834 = vmax.f32 %v801, 0.0
    %v835 = vcombine.low %v803, %v807
    %v836 = vcombine.high %v803, %v807
    %v838 = vunpack.c.l.s4 1983009808
    %v839 = vunpack.c.0.s8 %v838
    %v840 = vlaneseq
    %v841 = vshrl.u32 %v840, 7
    %v842 = vsub.s32 %v839, %v841
    %v843 = vrot.slane %v835, %v842
    %v845 = vunpack.c.l.s4 1983009808
    %v846 = vunpack.c.0.s8 %v845
    %v847 = vlaneseq
    %v848 = vshrl.u32 %v847, 7
    %v849 = vsub.s32 %v846, %v848
    %v850 = vrot.slane %v836, %v849
    %v851 = vcombine.low %v805, %v809
    %v852 = vcombine.high %v805, %v809
    %v854 = vunpack.c.l.s4 1983009808
    %v855 = vunpack.c.0.s8 %v854
    %v856 = vlaneseq
    %v857 = vshrl.u32 %v856, 7
    %v858 = vsub.s32 %v855, %v857
    %v859 = vrot.slane %v851, %v858
    %v861 = vunpack.c.l.s4 1983009808
    %v862 = vunpack.c.0.s8 %v861
    %v863 = vlaneseq
    %v864 = vshrl.u32 %v863, 7
    %v865 = vsub.s32 %v862, %v864
    %v866 = vrot.slane %v852, %v865
    %v867 = vcombine.low %v811, %v815
    %v868 = vcombine.high %v811, %v815
    %v870 = vunpack.c.l.s4 1983009808
    %v871 = vunpack.c.0.s8 %v870
    %v872 = vlaneseq
    %v873 = vshrl.u32 %v872, 7
    %v874 = vsub.s32 %v871, %v873
    %v875 = vrot.slane %v867, %v874
    %v877 = vunpack.c.l.s4 1983009808
    %v878 = vunpack.c.0.s8 %v877
    %v879 = vlaneseq
    %v880 = vshrl.u32 %v879, 7
    %v881 = vsub.s32 %v878, %v880
    %v882 = vrot.slane %v868, %v881
    %v883 = vcombine.low %v813, %v817
    %v884 = vcombine.high %v813, %v817
    %v886 = vunpack.c.l.s4 1983009808
    %v887 = vunpack.c.0.s8 %v886
    %v888 = vlaneseq
    %v889 = vshrl.u32 %v888, 7
    %v890 = vsub.s32 %v887, %v889
    %v891 = vrot.slane %v883, %v890
    %v893 = vunpack.c.l.s4 1983009808
    %v894 = vunpack.c.0.s8 %v893
    %v895 = vlaneseq
    %v896 = vshrl.u32 %v895, 7
    %v897 = vsub.s32 %v894, %v896
    %v898 = vrot.slane %v884, %v897
    %v899 = vcombine.low %v843, %v859
    %v900 = vcombine.high %v843, %v859
    %v902 = vunpack.c.l.s4 1934713408
    %v903 = vunpack.c.0.s8 %v902
    %v904 = vlaneseq
    %v905 = vshrl.u32 %v904, 7
    %v906 = vsub.s32 %v903, %v905
    %v907 = vrot.slane %v899, %v906
    %v909 = vunpack.c.l.s4 1934713408
    %v910 = vunpack.c.0.s8 %v909
    %v911 = vlaneseq
    %v912 = vshrl.u32 %v911, 7
    %v913 = vsub.s32 %v910, %v912
    %v914 = vrot.slane %v900, %v913
    %v915 = vcombine.low %v850, %v866
    %v916 = vcombine.high %v850, %v866
    %v918 = vunpack.c.l.s4 1934713408
    %v919 = vunpack.c.0.s8 %v918
    %v920 = vlaneseq
    %v921 = vshrl.u32 %v920, 7
    %v922 = vsub.s32 %v919, %v921
    %v923 = vrot.slane %v915, %v922
    %v925 = vunpack.c.l.s4 1934713408
    %v926 = vunpack.c.0.s8 %v925
    %v927 = vlaneseq
    %v928 = vshrl.u32 %v927, 7
    %v929 = vsub.s32 %v926, %v928
    %v930 = vrot.slane %v916, %v929
    %v931 = vcombine.low %v875, %v891
    %v932 = vcombine.high %v875, %v891
    %v934 = vunpack.c.l.s4 1934713408
    %v935 = vunpack.c.0.s8 %v934
    %v936 = vlaneseq
    %v937 = vshrl.u32 %v936, 7
    %v938 = vsub.s32 %v935, %v937
    %v939 = vrot.slane %v931, %v938
    %v941 = vunpack.c.l.s4 1934713408
    %v942 = vunpack.c.0.s8 %v941
    %v943 = vlaneseq
    %v944 = vshrl.u32 %v943, 7
    %v945 = vsub.s32 %v942, %v944
    %v946 = vrot.slane %v932, %v945
    %v947 = vcombine.low %v882, %v898
    %v948 = vcombine.high %v882, %v898
    %v950 = vunpack.c.l.s4 1934713408
    %v951 = vunpack.c.0.s8 %v950
    %v952 = vlaneseq
    %v953 = vshrl.u32 %v952, 7
    %v954 = vsub.s32 %v951, %v953
    %v955 = vrot.slane %v947, %v954
    %v957 = vunpack.c.l.s4 1934713408
    %v958 = vunpack.c.0.s8 %v957
    %v959 = vlaneseq
    %v960 = vshrl.u32 %v959, 7
    %v961 = vsub.s32 %v958, %v960
    %v962 = vrot.slane %v948, %v961
    %v963 = vcombine.low %v907, %v939
    %v964 = vcombine.high %v907, %v939
    %v965 = vcombine.low %v914, %v946
    %v966 = vcombine.high %v914, %v946
    %v967 = vcombine.low %v923, %v955
    %v968 = vcombine.high %v923, %v955
    %v969 = vcombine.low %v930, %v962
    %v970 = vcombine.high %v930, %v962
    %v971 = vcombine.low %v819, %v823
    %v972 = vcombine.high %v819, %v823
    %v974 = vunpack.c.l.s4 1983009808
    %v975 = vunpack.c.0.s8 %v974
    %v976 = vlaneseq
    %v977 = vshrl.u32 %v976, 7
    %v978 = vsub.s32 %v975, %v977
    %v979 = vrot.slane %v971, %v978
    %v981 = vunpack.c.l.s4 1983009808
    %v982 = vunpack.c.0.s8 %v981
    %v983 = vlaneseq
    %v984 = vshrl.u32 %v983, 7
    %v985 = vsub.s32 %v982, %v984
    %v986 = vrot.slane %v972, %v985
    %v987 = vcombine.low %v821, %v825
    %v988 = vcombine.high %v821, %v825
    %v990 = vunpack.c.l.s4 1983009808
    %v991 = vunpack.c.0.s8 %v990
    %v992 = vlaneseq
    %v993 = vshrl.u32 %v992, 7
    %v994 = vsub.s32 %v991, %v993
    %v995 = vrot.slane %v987, %v994
    %v997 = vunpack.c.l.s4 1983009808
    %v998 = vunpack.c.0.s8 %v997
    %v999 = vlaneseq
    %v1000 = vshrl.u32 %v999, 7
    %v1001 = vsub.s32 %v998, %v1000
    %v1002 = vrot.slane %v988, %v1001
    %v1003 = vcombine.low %v827, %v831
    %v1004 = vcombine.high %v827, %v831
    %v1006 = vunpack.c.l.s4 1983009808
    %v1007 = vunpack.c.0.s8 %v1006
    %v1008 = vlaneseq
    %v1009 = vshrl.u32 %v1008, 7
    %v1010 = vsub.s32 %v1007, %v1009
    %v1011 = vrot.slane %v1003, %v1010
    %v1013 = vunpack.c.l.s4 1983009808
    %v1014 = vunpack.c.0.s8 %v1013
    %v1015 = vlaneseq
    %v1016 = vshrl.u32 %v1015, 7
    %v1017 = vsub.s32 %v1014, %v1016
    %v1018 = vrot.slane %v1004, %v1017
    %v1019 = vcombine.low %v829, %v833
    %v1020 = vcombine.high %v829, %v833
    %v1022 = vunpack.c.l.s4 1983009808
    %v1023 = vunpack.c.0.s8 %v1022
    %v1024 = vlaneseq
    %v1025 = vshrl.u32 %v1024, 7
    %v1026 = vsub.s32 %v1023, %v1025
    %v1027 = vrot.slane %v1019, %v1026
    %v1029 = vunpack.c.l.s4 1983009808
    %v1030 = vunpack.c.0.s8 %v1029
    %v1031 = vlaneseq
    %v1032 = vshrl.u32 %v1031, 7
    %v1033 = vsub.s32 %v1030, %v1032
    %v1034 = vrot.slane %v1020, %v1033
    %v1035 = vcombine.low %v979, %v995
    %v1036 = vcombine.high %v979, %v995
    %v1038 = vunpack.c.l.s4 1934713408
    %v1039 = vunpack.c.0.s8 %v1038
    %v1040 = vlaneseq
    %v1041 = vshrl.u32 %v1040, 7
    %v1042 = vsub.s32 %v1039, %v1041
    %v1043 = vrot.slane %v1035, %v1042
    %v1045 = vunpack.c.l.s4 1934713408
    %v1046 = vunpack.c.0.s8 %v1045
    %v1047 = vlaneseq
    %v1048 = vshrl.u32 %v1047, 7
    %v1049 = vsub.s32 %v1046, %v1048
    %v1050 = vrot.slane %v1036, %v1049
    %v1051 = vcombine.low %v986, %v1002
    %v1052 = vcombine.high %v986, %v1002
    %v1054 = vunpack.c.l.s4 1934713408
    %v1055 = vunpack.c.0.s8 %v1054
    %v1056 = vlaneseq
    %v1057 = vshrl.u32 %v1056, 7
    %v1058 = vsub.s32 %v1055, %v1057
    %v1059 = vrot.slane %v1051, %v1058
    %v1061 = vunpack.c.l.s4 1934713408
    %v1062 = vunpack.c.0.s8 %v1061
    %v1063 = vlaneseq
    %v1064 = vshrl.u32 %v1063, 7
    %v1065 = vsub.s32 %v1062, %v1064
    %v1066 = vrot.slane %v1052, %v1065
    %v1067 = vcombine.low %v1011, %v1027
    %v1068 = vcombine.high %v1011, %v1027
    %v1070 = vunpack.c.l.s4 1934713408
    %v1071 = vunpack.c.0.s8 %v1070
    %v1072 = vlaneseq
    %v1073 = vshrl.u32 %v1072, 7
    %v1074 = vsub.s32 %v1071, %v1073
    %v1075 = vrot.slane %v1067, %v1074
    %v1077 = vunpack.c.l.s4 1934713408
    %v1078 = vunpack.c.0.s8 %v1077
    %v1079 = vlaneseq
    %v1080 = vshrl.u32 %v1079, 7
    %v1081 = vsub.s32 %v1078, %v1080
    %v1082 = vrot.slane %v1068, %v1081
    %v1083 = vcombine.low %v1018, %v1034
    %v1084 = vcombine.high %v1018, %v1034
    %v1086 = vunpack.c.l.s4 1934713408
    %v1087 = vunpack.c.0.s8 %v1086
    %v1088 = vlaneseq
    %v1089 = vshrl.u32 %v1088, 7
    %v1090 = vsub.s32 %v1087, %v1089
    %v1091 = vrot.slane %v1083, %v1090
    %v1093 = vunpack.c.l.s4 1934713408
    %v1094 = vunpack.c.0.s8 %v1093
    %v1095 = vlaneseq
    %v1096 = vshrl.u32 %v1095, 7
    %v1097 = vsub.s32 %v1094, %v1096
    %v1098 = vrot.slane %v1084, %v1097
    %v1099 = vcombine.low %v1043, %v1075
    %v1100 = vcombine.high %v1043, %v1075
    %v1101 = vcombine.low %v1050, %v1082
    %v1102 = vcombine.high %v1050, %v1082
    %v1103 = vcombine.low %v1059, %v1091
    %v1104 = vcombine.high %v1059, %v1091
    %v1105 = vcombine.low %v1066, %v1098
    %v1106 = vcombine.high %v1066, %v1098
    %v1107 = vcombine.low %v804, %v808
    %v1108 = vcombine.high %v804, %v808
    %v1110 = vunpack.c.l.s4 1983009808
    %v1111 = vunpack.c.0.s8 %v1110
    %v1112 = vlaneseq
    %v1113 = vshrl.u32 %v1112, 7
    %v1114 = vsub.s32 %v1111, %v1113
    %v1115 = vrot.slane %v1107, %v1114
    %v1117 = vunpack.c.l.s4 1983009808
    %v1118 = vunpack.c.0.s8 %v1117
    %v1119 = vlaneseq
    %v1120 = vshrl.u32 %v1119, 7
    %v1121 = vsub.s32 %v1118, %v1120
    %v1122 = vrot.slane %v1108, %v1121
    %v1123 = vcombine.low %v806, %v810
    %v1124 = vcombine.high %v806, %v810
    %v1126 = vunpack.c.l.s4 1983009808
    %v1127 = vunpack.c.0.s8 %v1126
    %v1128 = vlaneseq
    %v1129 = vshrl.u32 %v1128, 7
    %v1130 = vsub.s32 %v1127, %v1129
    %v1131 = vrot.slane %v1123, %v1130
    %v1133 = vunpack.c.l.s4 1983009808
    %v1134 = vunpack.c.0.s8 %v1133
    %v1135 = vlaneseq
    %v1136 = vshrl.u32 %v1135, 7
    %v1137 = vsub.s32 %v1134, %v1136
    %v1138 = vrot.slane %v1124, %v1137
    %v1139 = vcombine.low %v812, %v816
    %v1140 = vcombine.high %v812, %v816
    %v1142 = vunpack.c.l.s4 1983009808
    %v1143 = vunpack.c.0.s8 %v1142
    %v1144 = vlaneseq
    %v1145 = vshrl.u32 %v1144, 7
    %v1146 = vsub.s32 %v1143, %v1145
    %v1147 = vrot.slane %v1139, %v1146
    %v1149 = vunpack.c.l.s4 1983009808
    %v1150 = vunpack.c.0.s8 %v1149
    %v1151 = vlaneseq
    %v1152 = vshrl.u32 %v1151, 7
    %v1153 = vsub.s32 %v1150, %v1152
    %v1154 = vrot.slane %v1140, %v1153
    %v1155 = vcombine.low %v814, %v818
    %v1156 = vcombine.high %v814, %v818
    %v1158 = vunpack.c.l.s4 1983009808
    %v1159 = vunpack.c.0.s8 %v1158
    %v1160 = vlaneseq
    %v1161 = vshrl.u32 %v1160, 7
    %v1162 = vsub.s32 %v1159, %v1161
    %v1163 = vrot.slane %v1155, %v1162
    %v1165 = vunpack.c.l.s4 1983009808
    %v1166 = vunpack.c.0.s8 %v1165
    %v1167 = vlaneseq
    %v1168 = vshrl.u32 %v1167, 7
    %v1169 = vsub.s32 %v1166, %v1168
    %v1170 = vrot.slane %v1156, %v1169
    %v1171 = vcombine.low %v1115, %v1131
    %v1172 = vcombine.high %v1115, %v1131
    %v1174 = vunpack.c.l.s4 1934713408
    %v1175 = vunpack.c.0.s8 %v1174
    %v1176 = vlaneseq
    %v1177 = vshrl.u32 %v1176, 7
    %v1178 = vsub.s32 %v1175, %v1177
    %v1179 = vrot.slane %v1171, %v1178
    %v1181 = vunpack.c.l.s4 1934713408
    %v1182 = vunpack.c.0.s8 %v1181
    %v1183 = vlaneseq
    %v1184 = vshrl.u32 %v1183, 7
    %v1185 = vsub.s32 %v1182, %v1184
    %v1186 = vrot.slane %v1172, %v1185
    %v1187 = vcombine.low %v1122, %v1138
    %v1188 = vcombine.high %v1122, %v1138
    %v1190 = vunpack.c.l.s4 1934713408
    %v1191 = vunpack.c.0.s8 %v1190
    %v1192 = vlaneseq
    %v1193 = vshrl.u32 %v1192, 7
    %v1194 = vsub.s32 %v1191, %v1193
    %v1195 = vrot.slane %v1187, %v1194
    %v1197 = vunpack.c.l.s4 1934713408
    %v1198 = vunpack.c.0.s8 %v1197
    %v1199 = vlaneseq
    %v1200 = vshrl.u32 %v1199, 7
    %v1201 = vsub.s32 %v1198, %v1200
    %v1202 = vrot.slane %v1188, %v1201
    %v1203 = vcombine.low %v1147, %v1163
    %v1204 = vcombine.high %v1147, %v1163
    %v1206 = vunpack.c.l.s4 1934713408
    %v1207 = vunpack.c.0.s8 %v1206
    %v1208 = vlaneseq
    %v1209 = vshrl.u32 %v1208, 7
    %v1210 = vsub.s32 %v1207, %v1209
    %v1211 = vrot.slane %v1203, %v1210
    %v1213 = vunpack.c.l.s4 1934713408
    %v1214 = vunpack.c.0.s8 %v1213
    %v1215 = vlaneseq
    %v1216 = vshrl.u32 %v1215, 7
    %v1217 = vsub.s32 %v1214, %v1216
    %v1218 = vrot.slane %v1204, %v1217
    %v1219 = vcombine.low %v1154, %v1170
    %v1220 = vcombine.high %v1154, %v1170
    %v1222 = vunpack.c.l.s4 1934713408
    %v1223 = vunpack.c.0.s8 %v1222
    %v1224 = vlaneseq
    %v1225 = vshrl.u32 %v1224, 7
    %v1226 = vsub.s32 %v1223, %v1225
    %v1227 = vrot.slane %v1219, %v1226
    %v1229 = vunpack.c.l.s4 1934713408
    %v1230 = vunpack.c.0.s8 %v1229
    %v1231 = vlaneseq
    %v1232 = vshrl.u32 %v1231, 7
    %v1233 = vsub.s32 %v1230, %v1232
    %v1234 = vrot.slane %v1220, %v1233
    %v1235 = vcombine.low %v1179, %v1211
    %v1236 = vcombine.high %v1179, %v1211
    %v1237 = vcombine.low %v1186, %v1218
    %v1238 = vcombine.high %v1186, %v1218
    %v1239 = vcombine.low %v1195, %v1227
    %v1240 = vcombine.high %v1195, %v1227
    %v1241 = vcombine.low %v1202, %v1234
    %v1242 = vcombine.high %v1202, %v1234
    %v1243 = vcombine.low %v820, %v824
    %v1244 = vcombine.high %v820, %v824
    %v1246 = vunpack.c.l.s4 1983009808
    %v1247 = vunpack.c.0.s8 %v1246
    %v1248 = vlaneseq
    %v1249 = vshrl.u32 %v1248, 7
    %v1250 = vsub.s32 %v1247, %v1249
    %v1251 = vrot.slane %v1243, %v1250
    %v1253 = vunpack.c.l.s4 1983009808
    %v1254 = vunpack.c.0.s8 %v1253
    %v1255 = vlaneseq
    %v1256 = vshrl.u32 %v1255, 7
    %v1257 = vsub.s32 %v1254, %v1256
    %v1258 = vrot.slane %v1244, %v1257
    %v1259 = vcombine.low %v822, %v826
    %v1260 = vcombine.high %v822, %v826
    %v1262 = vunpack.c.l.s4 1983009808
    %v1263 = vunpack.c.0.s8 %v1262
    %v1264 = vlaneseq
    %v1265 = vshrl.u32 %v1264, 7
    %v1266 = vsub.s32 %v1263, %v1265
    %v1267 = vrot.slane %v1259, %v1266
    %v1269 = vunpack.c.l.s4 1983009808
    %v1270 = vunpack.c.0.s8 %v1269
    %v1271 = vlaneseq
    %v1272 = vshrl.u32 %v1271, 7
    %v1273 = vsub.s32 %v1270, %v1272
    %v1274 = vrot.slane %v1260, %v1273
    %v1275 = vcombine.low %v828, %v832
    %v1276 = vcombine.high %v828, %v832
    %v1278 = vunpack.c.l.s4 1983009808
    %v1279 = vunpack.c.0.s8 %v1278
    %v1280 = vlaneseq
    %v1281 = vshrl.u32 %v1280, 7
    %v1282 = vsub.s32 %v1279, %v1281
    %v1283 = vrot.slane %v1275, %v1282
    %v1285 = vunpack.c.l.s4 1983009808
    %v1286 = vunpack.c.0.s8 %v1285
    %v1287 = vlaneseq
    %v1288 = vshrl.u32 %v1287, 7
    %v1289 = vsub.s32 %v1286, %v1288
    %v1290 = vrot.slane %v1276, %v1289
    %v1291 = vcombine.low %v830, %v834
    %v1292 = vcombine.high %v830, %v834
    %v1294 = vunpack.c.l.s4 1983009808
    %v1295 = vunpack.c.0.s8 %v1294
    %v1296 = vlaneseq
    %v1297 = vshrl.u32 %v1296, 7
    %v1298 = vsub.s32 %v1295, %v1297
    %v1299 = vrot.slane %v1291, %v1298
    %v1301 = vunpack.c.l.s4 1983009808
    %v1302 = vunpack.c.0.s8 %v1301
    %v1303 = vlaneseq
    %v1304 = vshrl.u32 %v1303, 7
    %v1305 = vsub.s32 %v1302, %v1304
    %v1306 = vrot.slane %v1292, %v1305
    %v1307 = vcombine.low %v1251, %v1267
    %v1308 = vcombine.high %v1251, %v1267
    %v1310 = vunpack.c.l.s4 1934713408
    %v1311 = vunpack.c.0.s8 %v1310
    %v1312 = vlaneseq
    %v1313 = vshrl.u32 %v1312, 7
    %v1314 = vsub.s32 %v1311, %v1313
    %v1315 = vrot.slane %v1307, %v1314
    %v1317 = vunpack.c.l.s4 1934713408
    %v1318 = vunpack.c.0.s8 %v1317
    %v1319 = vlaneseq
    %v1320 = vshrl.u32 %v1319, 7
    %v1321 = vsub.s32 %v1318, %v1320
    %v1322 = vrot.slane %v1308, %v1321
    %v1323 = vcombine.low %v1258, %v1274
    %v1324 = vcombine.high %v1258, %v1274
    %v1326 = vunpack.c.l.s4 1934713408
    %v1327 = vunpack.c.0.s8 %v1326
    %v1328 = vlaneseq
    %v1329 = vshrl.u32 %v1328, 7
    %v1330 = vsub.s32 %v1327, %v1329
    %v1331 = vrot.slane %v1323, %v1330
    %v1333 = vunpack.c.l.s4 1934713408
    %v1334 = vunpack.c.0.s8 %v1333
    %v1335 = vlaneseq
    %v1336 = vshrl.u32 %v1335, 7
    %v1337 = vsub.s32 %v1334, %v1336
    %v1338 = vrot.slane %v1324, %v1337
    %v1339 = vcombine.low %v1283, %v1299
    %v1340 = vcombine.high %v1283, %v1299
    %v1342 = vunpack.c.l.s4 1934713408
    %v1343 = vunpack.c.0.s8 %v1342
    %v1344 = vlaneseq
    %v1345 = vshrl.u32 %v1344, 7
    %v1346 = vsub.s32 %v1343, %v1345
    %v1347 = vrot.slane %v1339, %v1346
    %v1349 = vunpack.c.l.s4 1934713408
    %v1350 = vunpack.c.0.s8 %v1349
    %v1351 = vlaneseq
    %v1352 = vshrl.u32 %v1351, 7
    %v1353 = vsub.s32 %v1350, %v1352
    %v1354 = vrot.slane %v1340, %v1353
    %v1355 = vcombine.low %v1290, %v1306
    %v1356 = vcombine.high %v1290, %v1306
    %v1358 = vunpack.c.l.s4 1934713408
    %v1359 = vunpack.c.0.s8 %v1358
    %v1360 = vlaneseq
    %v1361 = vshrl.u32 %v1360, 7
    %v1362 = vsub.s32 %v1359, %v1361
    %v1363 = vrot.slane %v1355, %v1362
    %v1365 = vunpack.c.l.s4 1934713408
    %v1366 = vunpack.c.0.s8 %v1365
    %v1367 = vlaneseq
    %v1368 = vshrl.u32 %v1367, 7
    %v1369 = vsub.s32 %v1366, %v1368
    %v1370 = vrot.slane %v1356, %v1369
    %v1371 = vcombine.low %v1315, %v1347
    %v1372 = vcombine.high %v1315, %v1347
    %v1373 = vcombine.low %v1322, %v1354
    %v1374 = vcombine.high %v1322, %v1354
    %v1375 = vcombine.low %v1331, %v1363
    %v1376 = vcombine.high %v1331, %v1363
    %v1377 = vcombine.low %v1338, %v1370
    %v1378 = vcombine.high %v1338, %v1370
    %v1379 = vadd.f32 %v963, %v1235
    %1380 = vadd.xlane.f32.xlu0 %v1379
    %v1381 = vpop.xlane.xlu0 %1380
    %v1382 = vadd.f32 %v964, %v1236
    %1383 = vadd.xlane.f32.xlu0 %v1382
    %v1384 = vpop.xlane.xlu0 %1383
    %v1385 = vadd.f32 %v965, %v1237
    %1386 = vadd.xlane.f32.xlu0 %v1385
    %v1387 = vpop.xlane.xlu0 %1386
    %v1388 = vadd.f32 %v966, %v1238
    %1389 = vadd.xlane.f32.xlu0 %v1388
    %v1390 = vpop.xlane.xlu0 %1389
    %v1391 = vadd.f32 %v967, %v1239
    %1392 = vadd.xlane.f32.xlu0 %v1391
    %v1393 = vpop.xlane.xlu0 %1392
    %v1394 = vadd.f32 %v968, %v1240
    %1395 = vadd.xlane.f32.xlu0 %v1394
    %v1396 = vpop.xlane.xlu0 %1395
    %v1397 = vadd.f32 %v969, %v1241
    %1398 = vadd.xlane.f32.xlu0 %v1397
    %v1399 = vpop.xlane.xlu0 %1398
    %v1400 = vadd.f32 %v970, %v1242
    %1401 = vadd.xlane.f32.xlu0 %v1400
    %v1402 = vpop.xlane.xlu0 %1401
    %v1403 = vadd.f32 %v1099, %v1371
    %1404 = vadd.xlane.f32.xlu0 %v1403
    %v1405 = vpop.xlane.xlu0 %1404
    %v1406 = vadd.f32 %v1100, %v1372
    %1407 = vadd.xlane.f32.xlu0 %v1406
    %v1408 = vpop.xlane.xlu0 %1407
    %v1409 = vadd.f32 %v1101, %v1373
    %1410 = vadd.xlane.f32.xlu0 %v1409
    %v1411 = vpop.xlane.xlu0 %1410
    %v1412 = vadd.f32 %v1102, %v1374
    %1413 = vadd.xlane.f32.xlu0 %v1412
    %v1414 = vpop.xlane.xlu0 %1413
    %v1415 = vadd.f32 %v1103, %v1375
    %1416 = vadd.xlane.f32.xlu0 %v1415
    %v1417 = vpop.xlane.xlu0 %1416
    %v1418 = vadd.f32 %v1104, %v1376
    %1419 = vadd.xlane.f32.xlu0 %v1418
    %v1420 = vpop.xlane.xlu0 %1419
    %v1421 = vadd.f32 %v1105, %v1377
    %1422 = vadd.xlane.f32.xlu0 %v1421
    %v1423 = vpop.xlane.xlu0 %1422
    %v1424 = vadd.f32 %v1106, %v1378
    %1425 = vadd.xlane.f32.xlu0 %v1424
    %v1426 = vpop.xlane.xlu0 %1425
    %v1427 = vrcp.pop 256.0
    %v1428 = vmul.f32 %v1381, %v1427
    %v1429 = vmul.f32 %v1384, %v1427
    %v1430 = vmul.f32 %v1387, %v1427
    %v1431 = vmul.f32 %v1390, %v1427
    %v1432 = vmul.f32 %v1393, %v1427
    %v1433 = vmul.f32 %v1396, %v1427
    %v1434 = vmul.f32 %v1399, %v1427
    %v1435 = vmul.f32 %v1402, %v1427
    %v1436 = vmul.f32 %v1405, %v1427
    %v1437 = vmul.f32 %v1408, %v1427
    %v1438 = vmul.f32 %v1411, %v1427
    %v1439 = vmul.f32 %v1414, %v1427
    %v1440 = vmul.f32 %v1417, %v1427
    %v1441 = vmul.f32 %v1420, %v1427
    %v1442 = vmul.f32 %v1423, %v1427
    %v1443 = vmul.f32 %v1426, %v1427
    %v1444 = vld [vmem:[%s0] sm:$0x1]
    %v1445 = vld [vmem:[%s4] sm:$0xff]
    %v1446 = vld [vmem:[%s4 + $0x8] sm:$0xff]
    %v1447 = vld [vmem:[%s5] sm:$0xff]
    %v1448 = vld [vmem:[%s5 + $0x8] sm:$0xff]
    %1450 = vset.pattern.permute.xlu0 0
    %1451 = vperm.xlu0 %1450, %v1447
    %v1452 = vpop.permute.xlu0 %1451
    %1455 = vset.pattern.permute.xlu0 0
    %1456 = vperm.xlu0 %1455, %v1448
    %v1457 = vpop.permute.xlu0 %1456
    %v1467 = vlaneseq
    %v1468 = vand.u32 %v1467, 127
    %v1469 = vlaneseq
    %v1470 = vshrl.u32 %v1469, 7
    %v1471 = vsub.s32 %v1468, %v1470
    %v1472 = vrot.slane %v1428, %v1471
    %v1473 = vlaneseq
    %v1474 = vshrl.u32 %v1473, 7
    %v1475 = vsub.s32 %v1468, %v1474
    %v1476 = vrot.slane %v1429, %v1475
    %v1477 = vlaneseq
    %v1478 = vshrl.u32 %v1477, 7
    %v1479 = vsub.s32 %v1468, %v1478
    %v1480 = vrot.slane %v1430, %v1479
    %v1481 = vlaneseq
    %v1482 = vshrl.u32 %v1481, 7
    %v1483 = vsub.s32 %v1468, %v1482
    %v1484 = vrot.slane %v1431, %v1483
    %v1485 = vlaneseq
    %v1486 = vshrl.u32 %v1485, 7
    %v1487 = vsub.s32 %v1468, %v1486
    %v1488 = vrot.slane %v1432, %v1487
    %v1489 = vlaneseq
    %v1490 = vshrl.u32 %v1489, 7
    %v1491 = vsub.s32 %v1468, %v1490
    %v1492 = vrot.slane %v1433, %v1491
    %v1493 = vlaneseq
    %v1494 = vshrl.u32 %v1493, 7
    %v1495 = vsub.s32 %v1468, %v1494
    %v1496 = vrot.slane %v1434, %v1495
    %v1497 = vlaneseq
    %v1498 = vshrl.u32 %v1497, 7
    %v1499 = vsub.s32 %v1468, %v1498
    %v1500 = vrot.slane %v1435, %v1499
    %vm1501 = vcmask 1041409
    %v1502 = vsel %vm1501, %v1476, %v1472
    %vm1503 = vcmask 1042434
    %v1504 = vsel %vm1503, %v1480, %v1502
    %vm1505 = vcmask 1043459
    %v1506 = vsel %vm1505, %v1484, %v1504
    %vm1507 = vcmask 1044484
    %v1508 = vsel %vm1507, %v1488, %v1506
    %vm1509 = vcmask 1045509
    %v1510 = vsel %vm1509, %v1492, %v1508
    %vm1511 = vcmask 1046534
    %v1512 = vsel %vm1511, %v1496, %v1510
    %vm1513 = vcmask 1047559
    %v1514 = vsel %vm1513, %v1500, %v1512
    %vm1516 = vcmask 64512
    %v1518 = vsel %vm1516, %v1445, 0
    %v1521 = vsel %vm1516, %v1446, 0
    %1523 = vmatprep.subr.mxu0 0.0
    %1524 = vmatpush1.msra.mxu0 %v1514
    %1525 = vmatprep.subr.mxu0 0.0
    %1526 = vmatpush1.msra.mxu0 0.0
    %1527 = vmatprep.subr.mxu0 0.0
    %1528 = vmatpush1.msra.mxu0 0.0
    %1529 = vmatprep.subr.mxu0 0.0
    %1530 = vmatpush1.msra.mxu0 0.0
    %1531 = vmatprep.subr.mxu0 0.0
    %1532 = vmatpush1.msra.mxu0 0.0
    %1533 = vmatprep.subr.mxu0 0.0
    %1534 = vmatpush1.msra.mxu0 0.0
    %1535 = vmatprep.subr.mxu0 0.0
    %1536 = vmatpush1.msra.mxu0 0.0
    %1537 = vmatprep.subr.mxu0 0.0
    %1538 = vmatpush1.msra.mxu0 0.0
    %1539 = vmatprep.subr.mxu0 0.0
    %1540 = vmatpush1.msra.mxu0 0.0
    %1541 = vmatprep.subr.mxu0 0.0
    %1542 = vmatpush1.msra.mxu0 0.0
    %1543 = vmatprep.subr.mxu0 0.0
    %1544 = vmatpush1.msra.mxu0 0.0
    %1545 = vmatprep.subr.mxu0 0.0
    %1546 = vmatpush1.msra.mxu0 0.0
    %1547 = vmatprep.subr.mxu0 0.0
    %1548 = vmatpush1.msra.mxu0 0.0
    %1549 = vmatprep.subr.mxu0 0.0
    %1550 = vmatpush1.msra.mxu0 0.0
    %1551 = vmatprep.subr.mxu0 0.0
    %1552 = vmatpush1.msra.mxu0 0.0
    %1553 = vmatprep.subr.mxu0 0.0
    %1554 = vmatpush1.msra.mxu0 0.0
    %1555 = vmatprep.subr.mxu0 0.0
    %1556 = vmatpush1.msra.mxu0 0.0
    %1557 = vmatprep.subr.mxu0 0.0
    %1558 = vmatpush1.msra.mxu0 0.0
    %1559 = vmatprep.subr.mxu0 0.0
    %1560 = vmatpush1.msra.mxu0 0.0
    %1561 = vmatprep.subr.mxu0 0.0
    %1562 = vmatpush1.msra.mxu0 0.0
    %1563 = vmatprep.subr.mxu0 0.0
    %1564 = vmatpush1.msra.mxu0 0.0
    %1565 = vmatprep.subr.mxu0 0.0
    %1566 = vmatpush1.msra.mxu0 0.0
    %1567 = vmatprep.subr.mxu0 0.0
    %1568 = vmatpush1.msra.mxu0 0.0
    %1569 = vmatprep.subr.mxu0 0.0
    %1570 = vmatpush1.msra.mxu0 0.0
    %1571 = vmatprep.subr.mxu0 0.0
    %1572 = vmatpush1.msra.mxu0 0.0
    %1573 = vmatprep.subr.mxu0 0.0
    %1574 = vmatpush1.msra.mxu0 0.0
    %1575 = vmatprep.subr.mxu0 0.0
    %1576 = vmatpush1.msra.mxu0 0.0
    %1577 = vmatprep.subr.mxu0 0.0
    %1578 = vmatpush1.msra.mxu0 0.0
    %1579 = vmatprep.subr.mxu0 0.0
    %1580 = vmatpush1.msra.mxu0 0.0
    %1581 = vmatprep.subr.mxu0 0.0
    %1582 = vmatpush1.msra.mxu0 0.0
    %1583 = vmatprep.subr.mxu0 0.0
    %1584 = vmatpush1.msra.mxu0 0.0
    %1585 = vmatprep.subr.mxu0 0.0
    %1586 = vmatpush1.msra.mxu0 0.0
    %1587 = vmatprep.mubr.f32.mxu0 0.0
    %1588 = vmatmul.mubr.f32.gmra.mrb[0].mxu0 %v1518
    %v1589 = vpop.f32.mrb[0].mxu0
    %v1590 = vadd.f32 %v1452, %v1589
    %v1591 = vpop.f32.mrb[0].mxu0
    %1592 = vmatprep.mubr.f32.mxu0 0.0
    %1593 = vmatmul.mubr.f32.gmra.mrb[0].mxu0 %v1521
    %v1594 = vpop.f32.mrb[0].mxu0
    %v1595 = vadd.f32 %v1457, %v1594
    %v1596 = vpop.f32.mrb[0].mxu0
    %1597 = vdwg.mxu0
    %vm1598 = vcmp.eq.s32.totalorder %v1444, 0
    %v1599 = vsel %vm1598, 1, 0
    %v1600 = vlaneseq
    %v1601 = vshrl.u32 %v1600, 7
    %v1602 = vsub.s32 0, %v1601
    %v1603 = vrot.slane %v1599, %v1602
    %vm1604 = vcmp.eq.s32.totalorder %v1603, 1
    %v1605 = vsel %vm1604, %v1590, 0.0
    %v1606 = vsel %vm1604, %v1595, 0.0
    %v1607 = vadd.f32 %v1605, 0.0
    %v1608 = vadd.f32 %v1606, 0.0
    %s1609 = scalar_lea.vmem %s4, 16
    %v1610 = vld [vmem:[%s1609] sm:$0xff]
    %v1611 = vld [vmem:[%s1609 + $0x8] sm:$0xff]
    %s1612 = scalar_lea.vmem %s5, 16
    %v1613 = vld [vmem:[%s1612] sm:$0xff]
    %v1614 = vld [vmem:[%s1612 + $0x8] sm:$0xff]
    %1616 = vset.pattern.permute.xlu0 0
    %1617 = vperm.xlu0 %1616, %v1613
    %v1618 = vpop.permute.xlu0 %1617
    %1621 = vset.pattern.permute.xlu0 0
    %1622 = vperm.xlu0 %1621, %v1614
    %v1623 = vpop.permute.xlu0 %1622
    %v1633 = vlaneseq
    %v1634 = vshrl.u32 %v1633, 7
    %v1635 = vsub.s32 %v1468, %v1634
    %v1636 = vrot.slane %v1436, %v1635
    %v1637 = vlaneseq
    %v1638 = vshrl.u32 %v1637, 7
    %v1639 = vsub.s32 %v1468, %v1638
    %v1640 = vrot.slane %v1437, %v1639
    %v1641 = vlaneseq
    %v1642 = vshrl.u32 %v1641, 7
    %v1643 = vsub.s32 %v1468, %v1642
    %v1644 = vrot.slane %v1438, %v1643
    %v1645 = vlaneseq
    %v1646 = vshrl.u32 %v1645, 7
    %v1647 = vsub.s32 %v1468, %v1646
    %v1648 = vrot.slane %v1439, %v1647
    %v1649 = vlaneseq
    %v1650 = vshrl.u32 %v1649, 7
    %v1651 = vsub.s32 %v1468, %v1650
    %v1652 = vrot.slane %v1440, %v1651
    %v1653 = vlaneseq
    %v1654 = vshrl.u32 %v1653, 7
    %v1655 = vsub.s32 %v1468, %v1654
    %v1656 = vrot.slane %v1441, %v1655
    %v1657 = vlaneseq
    %v1658 = vshrl.u32 %v1657, 7
    %v1659 = vsub.s32 %v1468, %v1658
    %v1660 = vrot.slane %v1442, %v1659
    %v1661 = vlaneseq
    %v1662 = vshrl.u32 %v1661, 7
    %v1663 = vsub.s32 %v1468, %v1662
    %v1664 = vrot.slane %v1443, %v1663
    %v1665 = vsel %vm1501, %v1640, %v1636
    %v1666 = vsel %vm1503, %v1644, %v1665
    %v1667 = vsel %vm1505, %v1648, %v1666
    %v1668 = vsel %vm1507, %v1652, %v1667
    %v1669 = vsel %vm1509, %v1656, %v1668
    %v1670 = vsel %vm1511, %v1660, %v1669
    %v1671 = vsel %vm1513, %v1664, %v1670
    %v1674 = vsel %vm1516, %v1610, 0
    %v1677 = vsel %vm1516, %v1611, 0
    %1679 = vmatprep.subr.mxu0 0.0
    %1680 = vmatpush1.msra.mxu0 %v1671
    %1681 = vmatprep.subr.mxu0 0.0
    %1682 = vmatpush1.msra.mxu0 0.0
    %1683 = vmatprep.subr.mxu0 0.0
    %1684 = vmatpush1.msra.mxu0 0.0
    %1685 = vmatprep.subr.mxu0 0.0
    %1686 = vmatpush1.msra.mxu0 0.0
    %1687 = vmatprep.subr.mxu0 0.0
    %1688 = vmatpush1.msra.mxu0 0.0
    %1689 = vmatprep.subr.mxu0 0.0
    %1690 = vmatpush1.msra.mxu0 0.0
    %1691 = vmatprep.subr.mxu0 0.0
    %1692 = vmatpush1.msra.mxu0 0.0
    %1693 = vmatprep.subr.mxu0 0.0
    %1694 = vmatpush1.msra.mxu0 0.0
    %1695 = vmatprep.subr.mxu0 0.0
    %1696 = vmatpush1.msra.mxu0 0.0
    %1697 = vmatprep.subr.mxu0 0.0
    %1698 = vmatpush1.msra.mxu0 0.0
    %1699 = vmatprep.subr.mxu0 0.0
    %1700 = vmatpush1.msra.mxu0 0.0
    %1701 = vmatprep.subr.mxu0 0.0
    %1702 = vmatpush1.msra.mxu0 0.0
    %1703 = vmatprep.subr.mxu0 0.0
    %1704 = vmatpush1.msra.mxu0 0.0
    %1705 = vmatprep.subr.mxu0 0.0
    %1706 = vmatpush1.msra.mxu0 0.0
    %1707 = vmatprep.subr.mxu0 0.0
    %1708 = vmatpush1.msra.mxu0 0.0
    %1709 = vmatprep.subr.mxu0 0.0
    %1710 = vmatpush1.msra.mxu0 0.0
    %1711 = vmatprep.subr.mxu0 0.0
    %1712 = vmatpush1.msra.mxu0 0.0
    %1713 = vmatprep.subr.mxu0 0.0
    %1714 = vmatpush1.msra.mxu0 0.0
    %1715 = vmatprep.subr.mxu0 0.0
    %1716 = vmatpush1.msra.mxu0 0.0
    %1717 = vmatprep.subr.mxu0 0.0
    %1718 = vmatpush1.msra.mxu0 0.0
    %1719 = vmatprep.subr.mxu0 0.0
    %1720 = vmatpush1.msra.mxu0 0.0
    %1721 = vmatprep.subr.mxu0 0.0
    %1722 = vmatpush1.msra.mxu0 0.0
    %1723 = vmatprep.subr.mxu0 0.0
    %1724 = vmatpush1.msra.mxu0 0.0
    %1725 = vmatprep.subr.mxu0 0.0
    %1726 = vmatpush1.msra.mxu0 0.0
    %1727 = vmatprep.subr.mxu0 0.0
    %1728 = vmatpush1.msra.mxu0 0.0
    %1729 = vmatprep.subr.mxu0 0.0
    %1730 = vmatpush1.msra.mxu0 0.0
    %1731 = vmatprep.subr.mxu0 0.0
    %1732 = vmatpush1.msra.mxu0 0.0
    %1733 = vmatprep.subr.mxu0 0.0
    %1734 = vmatpush1.msra.mxu0 0.0
    %1735 = vmatprep.subr.mxu0 0.0
    %1736 = vmatpush1.msra.mxu0 0.0
    %1737 = vmatprep.subr.mxu0 0.0
    %1738 = vmatpush1.msra.mxu0 0.0
    %1739 = vmatprep.subr.mxu0 0.0
    %1740 = vmatpush1.msra.mxu0 0.0
    %1741 = vmatprep.subr.mxu0 0.0
    %1742 = vmatpush1.msra.mxu0 0.0
    %1743 = vmatprep.mubr.f32.mxu0 0.0
    %1744 = vmatmul.mubr.f32.gmra.mrb[0].mxu0 %v1674
    %v1745 = vpop.f32.mrb[0].mxu0
    %v1746 = vadd.f32 %v1618, %v1745
    %v1747 = vpop.f32.mrb[0].mxu0
    %1748 = vmatprep.mubr.f32.mxu0 0.0
    %1749 = vmatmul.mubr.f32.gmra.mrb[0].mxu0 %v1677
    %v1750 = vpop.f32.mrb[0].mxu0
    %v1751 = vadd.f32 %v1623, %v1750
    %v1752 = vpop.f32.mrb[0].mxu0
    %1753 = vdwg.mxu0
    %vm1754 = vcmp.eq.s32.totalorder %v1444, 1
    %v1755 = vsel %vm1754, 1, 0
    %v1756 = vlaneseq
    %v1757 = vshrl.u32 %v1756, 7
    %v1758 = vsub.s32 0, %v1757
    %v1759 = vrot.slane %v1755, %v1758
    %vm1760 = vcmp.eq.s32.totalorder %v1759, 1
    %v1761 = vsel %vm1760, %v1746, 0.0
    %v1762 = vsel %vm1760, %v1751, 0.0
    %v1763 = vadd.f32 %v1607, %v1761
    %v1764 = vadd.f32 %v1608, %v1762
    %1765 = vst.msk [vmem:[%s6] sm:$0xff] %vm1516, %v1763
    %1766 = vst.msk [vmem:[%s6 + $0x8] sm:$0xff] %vm1516, %v1764
    // Predicated region
    $region30: #{tpu_custom_call.1} parent=1 // pred_check
      _
    $region31: #{tpu_custom_call.1} parent=1 // pred_check_branch
      %1768 = sbr.rel (0) target = $region33
    $region32: #{tpu_custom_call.1} parent=1 // pred_region
      _
    $region33: #{tpu_custom_call.1} parent=1 // pred_fallthru
      _
    // Predicated region
    $region34: #{tpu_custom_call.1} parent=1 // pred_check
      _
    $region35: #{tpu_custom_call.1} parent=1 // pred_check_branch
      %1770 = sbr.rel (0) target = $region37
    $region36: #{tpu_custom_call.1} parent=1 // pred_region
      _
    $region37: #{tpu_custom_call.1} parent=1 // pred_fallthru
      _
    %1771 = vsyncpa [#allocation3], 1

</llo_original>
